<compile_context>
chip_gen: v6e
topology: v6e:2x2x1
jax: 0.10.0
libtpu: 0.0.40
codegen_flags: <defaults>
</compile_context>

<pallas_src>
import jax
import jax.numpy as jnp
from jax.experimental import pallas as pl
from jax.experimental.pallas import tpu as pltpu


# ----------------------------------------------------------------------------
# helpers
# ----------------------------------------------------------------------------
def _round_up(x, m):
    return (x + m - 1) // m * m


def _bn_fold(gamma, beta, mean, var, eps=1e-5):
    scale = gamma / jnp.sqrt(var + eps)
    bias = beta - mean * scale
    return scale, bias


def _im2col(x, k, stride, padding, pad_value=0.0):
    """x: [N, H, W, C] NHWC. Returns list of k*k strided slices + output dims."""
    n, h, w, c = x.shape
    xp = jnp.pad(x, ((0, 0), (padding, padding), (padding, padding), (0, 0)),
                 constant_values=pad_value)
    ho = (h + 2 * padding - k) // stride + 1
    wo = (w + 2 * padding - k) // stride + 1
    pats = []
    for i in range(k):
        for j in range(k):
            pats.append(jax.lax.slice(
                xp,
                (0, i, j, 0),
                (n, i + stride * (ho - 1) + 1, j + stride * (wo - 1) + 1, c),
                (1, stride, stride, 1)))
    return pats, (n, ho, wo)


# ----------------------------------------------------------------------------
# Pallas kernels
# ----------------------------------------------------------------------------
def _mm_body(a_ref, b_ref, s_ref, bias_ref, r_ref, o_ref, relu):
    # The output block index is constant over the K grid axis, so o_ref stays
    # resident in VMEM across the whole reduction -> accumulate in place.
    @pl.when(pl.program_id(2) == 0)
    def _():
        o_ref[...] = jnp.zeros_like(o_ref)

    o_ref[...] += jnp.dot(a_ref[...], b_ref[...],
                          preferred_element_type=jnp.float32)

    @pl.when(pl.program_id(2) == pl.num_programs(2) - 1)
    def _():
        y = o_ref[...] * s_ref[...] + bias_ref[...]
        if r_ref is not None:
            y = y + r_ref[...]
        if relu:
            y = jnp.maximum(y, 0.0)
        o_ref[...] = y


def _make_mm_kernel(relu, has_res):
    if has_res:
        def kernel(a_ref, b_ref, s_ref, bias_ref, r_ref, o_ref):
            _mm_body(a_ref, b_ref, s_ref, bias_ref, r_ref, o_ref, relu)
    else:
        def kernel(a_ref, b_ref, s_ref, bias_ref, o_ref):
            _mm_body(a_ref, b_ref, s_ref, bias_ref, None, o_ref, relu)
    return kernel


def fused_matmul(a, b, scale, bias, residual=None, relu=False,
                 compute_dtype=jnp.bfloat16):
    """(M,K)x(K,N) matmul (MXU in `compute_dtype`, f32 accumulate) with
    per-column scale/bias, optional residual add + ReLU in the epilogue."""
    m, k = a.shape
    _, n = b.shape

    # ---- tile selection ----------------------------------------------------
    mp8 = _round_up(m, 8)
    tm = min(512, mp8)
    np_ = _round_up(n, 128)
    tn = 256 if np_ % 256 == 0 else 128
    # keep at least two parallel (M, N) output blocks so both v7x TensorCores
    # get work on the small late-layer matmuls.
    if (_round_up(mp8, tm) // tm) * (np_ // tn) < 2:
        if tn > 128:
            tn = 128
        elif tm >= 16 and (tm // 2) % 8 == 0:
            tm //= 2
    mp = _round_up(m, tm)
    # K tile: largest of 512/256/128 that adds no padding beyond the 128 minimum.
    kp_min = _round_up(k, 128)
    tk = 128
    for cand in (512, 256):
        if _round_up(k, cand) == kp_min:
            tk = cand
            break
    kp = _round_up(k, tk)

    # ---- operand prep (cast before pad so the pad copy is half-width) -------
    a_p = jnp.pad(a.astype(compute_dtype), ((0, mp - m), (0, kp - k)))
    b_p = jnp.pad(b.astype(compute_dtype), ((0, kp - k), (0, np_ - n)))
    s_p = jnp.pad(scale.astype(jnp.float32).reshape(1, -1),
                  ((0, 0), (0, np_ - n)))
    bi_p = jnp.pad(bias.astype(jnp.float32).reshape(1, -1),
                   ((0, 0), (0, np_ - n)))

    inputs = [a_p, b_p, s_p, bi_p]
    in_specs = [
        pl.BlockSpec((tm, tk), lambda i, j, kk: (i, kk)),
        pl.BlockSpec((tk, tn), lambda i, j, kk: (kk, j)),
        pl.BlockSpec((1, tn), lambda i, j, kk: (0, j)),
        pl.BlockSpec((1, tn), lambda i, j, kk: (0, j)),
    ]
    if residual is not None:
        r_p = jnp.pad(residual.astype(jnp.float32),
                      ((0, mp - m), (0, np_ - n)))
        inputs.append(r_p)
        in_specs.append(pl.BlockSpec((tm, tn), lambda i, j, kk: (i, j)))

    out = pl.pallas_call(
        _make_mm_kernel(relu, residual is not None),
        out_shape=jax.ShapeDtypeStruct((mp, np_), jnp.float32),
        grid_spec=pltpu.PrefetchScalarGridSpec(
            num_scalar_prefetch=0,
            grid=(mp // tm, np_ // tn, kp // tk),
            in_specs=in_specs,
            out_specs=pl.BlockSpec((tm, tn), lambda i, j, kk: (i, j))),
        compiler_params=pltpu.CompilerParams(
            dimension_semantics=("parallel", "parallel", "arbitrary"),
            vmem_limit_bytes=32 * 1024 * 1024),
    )(*inputs)
    if mp == m and np_ == n:
        return out
    return out[:m, :n]


def _make_pool_kernel(mode, window):
    def kernel(p_ref, o_ref):
        x = p_ref[...]                       # (P, tr, 128) lane-dense
        if mode == "max":
            o_ref[...] = jnp.max(x, axis=0)
        else:
            o_ref[...] = jnp.sum(x, axis=0) * (1.0 / window)
    return kernel


def pool_reduce(patches, mode):
    """patches: [P, M, C] -> reduce over window axis P (max or mean).

    Rows are flattened to a lane-dense (rows, 128) layout so the output stores
    are full-lane vst (C=64 would otherwise give masked half-lane stores)."""
    p, m, c = patches.shape
    lanes = 128
    total = m * c
    r = pl.cdiv(total, lanes)
    tr = min(512, _round_up(r, 8))
    rp = _round_up(r, tr)

    flat = patches.reshape(p, total)
    flat = jnp.pad(flat, ((0, 0), (0, rp * lanes - total)))
    x3 = flat.reshape(p, rp, lanes)

    out = pl.pallas_call(
        _make_pool_kernel(mode, p),
        out_shape=jax.ShapeDtypeStruct((rp, lanes), jnp.float32),
        grid_spec=pltpu.PrefetchScalarGridSpec(
            num_scalar_prefetch=0,
            grid=(rp // tr,),
            in_specs=[pl.BlockSpec((p, tr, lanes), lambda i: (0, i, 0))],
            out_specs=pl.BlockSpec((tr, lanes), lambda i: (i, 0))),
        compiler_params=pltpu.CompilerParams(
            dimension_semantics=("parallel",),
            vmem_limit_bytes=32 * 1024 * 1024),
    )(x3)
    return out.reshape(rp * lanes)[:total].reshape(m, c)


# ----------------------------------------------------------------------------
# model glue (im2col + kernel calls)
# ----------------------------------------------------------------------------
def conv_bn(x, w, scale, bias, stride, padding, relu, residual=None):
    kh, kw, cin, cout = w.shape
    # im2col is built directly in bf16 (MXU operand dtype) to halve HBM bytes.
    pats, (n, ho, wo) = _im2col(x.astype(jnp.bfloat16), kh, stride, padding)
    a = jnp.stack(pats, axis=3).reshape(n * ho * wo, kh * kw * cin)
    b = w.reshape(kh * kw * cin, cout)
    res = residual.reshape(n * ho * wo, cout) if residual is not None else None
    out = fused_matmul(a, b, scale, bias, residual=res, relu=relu,
                       compute_dtype=jnp.bfloat16)
    return out.reshape(n, ho, wo, cout)


def maxpool_3x3_s2_p1(x):
    pats, (n, ho, wo) = _im2col(x, 3, 2, 1, pad_value=-jnp.inf)
    patches = jnp.stack(pats, axis=0).reshape(9, n * ho * wo, x.shape[-1])
    return pool_reduce(patches, "max").reshape(n, ho, wo, x.shape[-1])


def avgpool_7_s1_p2(x):
    # count_include_pad=True (torch default): divide by 49 always.
    pats, (n, ho, wo) = _im2col(x, 7, 1, 2, pad_value=0.0)
    patches = jnp.stack(pats, axis=0).reshape(49, n * ho * wo, x.shape[-1])
    return pool_reduce(patches, "avg").reshape(n, ho, wo, x.shape[-1])


def basic_block(x, blk):
    s1, b1 = _bn_fold(**blk["bn1"])
    s2, b2 = _bn_fold(**blk["bn2"])
    out = conv_bn(x, blk["conv1"], s1, b1,
                  stride=blk["stride"], padding=1, relu=True)
    if "ds_conv" in blk:
        sd, bd = _bn_fold(**blk["ds_bn"])
        identity = conv_bn(x, blk["ds_conv"], sd, bd,
                           stride=blk["stride"], padding=0, relu=False)
    else:
        identity = x
    # conv2 + bn2 + residual add + relu fused in one Pallas kernel (f32 epilogue)
    out = conv_bn(out, blk["conv2"], s2, b2,
                  stride=1, padding=1, relu=True, residual=identity)
    return out


def resnet_forward(params, x_nchw, num_classes):
    x = jnp.transpose(x_nchw, (0, 2, 3, 1))        # NCHW -> NHWC
    s, b = _bn_fold(**params["bn1"])
    x = conv_bn(x, params["conv1"], s, b, stride=2, padding=3, relu=True)
    x = maxpool_3x3_s2_p1(x)
    for blocks in params["layers"]:
        for blk in blocks:
            x = basic_block(x, blk)
    x = avgpool_7_s1_p2(x)
    # match torch's x.view(B, -1) on NCHW: flatten in (C, H, W) order
    x = jnp.transpose(x, (0, 3, 1, 2)).reshape(x.shape[0], -1)
    fc_out = params["fc_w"].shape[1]
    # CORAL head kept fully in f32.
    logits_flat = fused_matmul(x, params["fc_w"],
                               jnp.ones((fc_out,), jnp.float32),
                               params["fc_b"], relu=False,
                               compute_dtype=jnp.float32)
    logits = logits_flat.reshape(-1, num_classes - 1, 2)
    probas = jax.nn.softmax(logits, axis=2)[:, :, 1]   # tiny; plain JAX
    return logits, probas


# ----------------------------------------------------------------------------
# deterministic parameter initialization (mirrors ResNet.__init__, BasicBlock)
# ----------------------------------------------------------------------------
def _conv_init(key, kh, kw, cin, cout):
    n = kh * kw * cout
    std = (2.0 / n) ** 0.5
    return jax.random.normal(key, (kh, kw, cin, cout), jnp.float32) * std


def _bn_init(c):
    return dict(gamma=jnp.ones((c,), jnp.float32),
                beta=jnp.zeros((c,), jnp.float32),
                mean=jnp.zeros((c,), jnp.float32),
                var=jnp.ones((c,), jnp.float32))


def init_resnet_params(key, layers, num_classes, grayscale):
    expansion = 1                                    # BasicBlock.expansion
    in_dim = 1 if grayscale else 3
    keys = iter(jax.random.split(key, 256))
    params = {"conv1": _conv_init(next(keys), 7, 7, in_dim, 64),
              "bn1": _bn_init(64)}
    inplanes = 64
    all_layers = []
    for planes, nblocks, stride in zip([64, 128, 256, 512], layers, [1, 2, 2, 2]):
        blocks = []
        for bi in range(nblocks):
            s = stride if bi == 0 else 1
            blk = {
                "conv1": _conv_init(next(keys), 3, 3, inplanes, planes),
                "bn1": _bn_init(planes),
                "conv2": _conv_init(next(keys), 3, 3, planes, planes),
                "bn2": _bn_init(planes),
                "stride": s,
            }
            if s != 1 or inplanes != planes * expansion:
                blk["ds_conv"] = _conv_init(next(keys), 1, 1, inplanes,
                                            planes * expansion)
                blk["ds_bn"] = _bn_init(planes * expansion)
            blocks.append(blk)
            inplanes = planes * expansion
        all_layers.append(blocks)
    params["layers"] = all_layers

    fc_in = 2048 * expansion
    fc_out = (num_classes - 1) * 2
    bound = 1.0 / (fc_in ** 0.5)
    kw_, kb_ = jax.random.split(next(keys))
    params["fc_w"] = jax.random.uniform(kw_, (fc_in, fc_out), jnp.float32,
                                        -bound, bound)
    params["fc_b"] = jax.random.uniform(kb_, (fc_out,), jnp.float32,
                                        -bound, bound)
    return params


# ----------------------------------------------------------------------------
if __name__ == "__main__":
    key = jax.random.PRNGKey(0)
    num_classes = 4
    grayscale = True
    layers = [1, 1, 1, 1]       # small block counts; structure identical
    B = 2
    # 128x128 input is required: fc expects 2048 = 512 * 2 * 2 features
    # (avgpool(7, stride=1, padding=2) over the 4x4 layer4 output -> 2x2).
    H = W = 128

    kp, kx = jax.random.split(key)
    params = init_resnet_params(kp, layers, num_classes, grayscale)
    x = jax.random.normal(kx, (B, 1 if grayscale else 3, H, W), jnp.float32)

    logits, probas = resnet_forward(params, x, num_classes)
    jax.block_until_ready((logits, probas))
    assert logits.shape == (B, num_classes - 1, 2)
    assert probas.shape == (B, num_classes - 1)
    print("KERNEL_OK")
</pallas_src>

<mosaic_0001>
module attributes {stable_mosaic.version = 11 : i64} {
  func.func @kernel(%arg0: i32, %arg1: i32, %arg2: i32, %arg3: memref<512x128xbf16, #tpu.memory_space<vmem>>, %arg4: memref<128x128xbf16, #tpu.memory_space<vmem>>, %arg5: memref<1x128xf32, #tpu.memory_space<vmem>>, %arg6: memref<1x128xf32, #tpu.memory_space<vmem>>, %arg7: memref<512x128xf32, #tpu.memory_space<vmem>>) attributes {dimension_semantics = [#tpu.dimension_semantics<parallel>, #tpu.dimension_semantics<parallel>, #tpu.dimension_semantics<arbitrary>], iteration_bounds = array<i64: 16, 1, 1>, scalar_prefetch = 0 : i64, scratch_operands = 0 : i64, tpu.core_type = #tpu.core_type<tc>, window_params = [{transform_indices = @transform_0, window_bounds = array<i64: 512, 128>}, {transform_indices = @transform_1, window_bounds = array<i64: 128, 128>}, {transform_indices = @transform_2, window_bounds = array<i64: 1, 128>}, {transform_indices = @transform_3, window_bounds = array<i64: 1, 128>}, {transform_indices = @transform_4, window_bounds = array<i64: 512, 128>}]} {
    %c0_i32 = arith.constant 0 : i32
    %0 = arith.cmpi eq, %arg2, %c0_i32 : i32
    %1 = arith.extui %0 : i1 to i32
    %c0_i32_0 = arith.constant 0 : i32
    %2 = arith.cmpi ne, %1, %c0_i32_0 : i32
    scf.if %2 {
      %cst_10 = arith.constant 0.000000e+00 : f32
      %12 = vector.broadcast %cst_10 : f32 to vector<512x128xf32>
      %c0_11 = arith.constant 0 : index
      %c0_12 = arith.constant 0 : index
      %13 = vector.load %arg7[%c0_11, %c0_12] : memref<512x128xf32, #tpu.memory_space<vmem>>, vector<512x128xf32>
      tpu.vector_store %arg7[%c0_11, %c0_12], %12 {strides = array<i32>} : memref<512x128xf32, #tpu.memory_space<vmem>>, vector<512x128xf32>,
    } else {
    }
    %c0 = arith.constant 0 : index
    %c0_1 = arith.constant 0 : index
    %3 = vector.load %arg7[%c0, %c0_1] : memref<512x128xf32, #tpu.memory_space<vmem>>, vector<512x128xf32>
    %c0_2 = arith.constant 0 : index
    %c0_3 = arith.constant 0 : index
    %4 = vector.load %arg3[%c0_2, %c0_3] : memref<512x128xbf16, #tpu.memory_space<vmem>>, vector<512x128xbf16>
    %c0_4 = arith.constant 0 : index
    %c0_5 = arith.constant 0 : index
    %5 = vector.load %arg4[%c0_4, %c0_5] : memref<128x128xbf16, #tpu.memory_space<vmem>>, vector<128x128xbf16>
    %cst = arith.constant dense<0.000000e+00> : vector<512x128xf32>
    %6 = tpu.matmul %4, %5, %cst {dimension_numbers = #tpu.dot_dimension_numbers<[1], [0], [0], [1], [0, 0, 1, 1], [], []>} : vector<512x128xbf16>, vector<128x128xbf16>, vector<512x128xf32> -> vector<512x128xf32>
    %7 = arith.addf %3, %6 : vector<512x128xf32>
    %c0_6 = arith.constant 0 : index
    %c0_7 = arith.constant 0 : index
    %8 = vector.load %arg7[%c0_6, %c0_7] : memref<512x128xf32, #tpu.memory_space<vmem>>, vector<512x128xf32>
    tpu.vector_store %arg7[%c0_6, %c0_7], %7 {strides = array<i32>} : memref<512x128xf32, #tpu.memory_space<vmem>>, vector<512x128xf32>,
    %c0_i32_8 = arith.constant 0 : i32
    %9 = arith.cmpi eq, %arg2, %c0_i32_8 : i32
    %10 = arith.extui %9 : i1 to i32
    %c0_i32_9 = arith.constant 0 : i32
    %11 = arith.cmpi ne, %10, %c0_i32_9 : i32
    scf.if %11 {
      %c0_10 = arith.constant 0 : index
      %c0_11 = arith.constant 0 : index
      %12 = vector.load %arg7[%c0_10, %c0_11] : memref<512x128xf32, #tpu.memory_space<vmem>>, vector<512x128xf32>
      %c0_12 = arith.constant 0 : index
      %c0_13 = arith.constant 0 : index
      %13 = vector.load %arg5[%c0_12, %c0_13] : memref<1x128xf32, #tpu.memory_space<vmem>>, vector<1x128xf32>
      %14 = vector.broadcast %13 : vector<1x128xf32> to vector<512x128xf32>
      %15 = arith.mulf %12, %14 : vector<512x128xf32>
      %c0_14 = arith.constant 0 : index
      %c0_15 = arith.constant 0 : index
      %16 = vector.load %arg6[%c0_14, %c0_15] : memref<1x128xf32, #tpu.memory_space<vmem>>, vector<1x128xf32>
      %17 = vector.broadcast %16 : vector<1x128xf32> to vector<512x128xf32>
      %18 = arith.addf %15, %17 : vector<512x128xf32>
      %cst_16 = arith.constant 0.000000e+00 : f32
      %19 = vector.broadcast %cst_16 : f32 to vector<512x128xf32>
      %20 = arith.maximumf %18, %19 : vector<512x128xf32>
      %c0_17 = arith.constant 0 : index
      %c0_18 = arith.constant 0 : index
      %21 = vector.load %arg7[%c0_17, %c0_18] : memref<512x128xf32, #tpu.memory_space<vmem>>, vector<512x128xf32>
      tpu.vector_store %arg7[%c0_17, %c0_18], %20 {strides = array<i32>} : memref<512x128xf32, #tpu.memory_space<vmem>>, vector<512x128xf32>,
    } else {
    }
    return
  }
  func.func @transform_0(%arg0: i32, %arg1: i32, %arg2: i32) -> (i32, i32) {
    %c0_i32 = arith.constant 0 : i32
    return %arg0, %arg2 : i32, i32
  }
  func.func @transform_1(%arg0: i32, %arg1: i32, %arg2: i32) -> (i32, i32) {
    %c0_i32 = arith.constant 0 : i32
    return %arg2, %arg1 : i32, i32
  }
  func.func @transform_2(%arg0: i32, %arg1: i32, %arg2: i32) -> (i32, i32) {
    %c0_i32 = arith.constant 0 : i32
    %c0_i32_0 = arith.constant 0 : i32
    return %c0_i32, %arg1 : i32, i32
  }
  func.func @transform_3(%arg0: i32, %arg1: i32, %arg2: i32) -> (i32, i32) {
    %c0_i32 = arith.constant 0 : i32
    %c0_i32_0 = arith.constant 0 : i32
    return %c0_i32, %arg1 : i32, i32
  }
  func.func @transform_4(%arg0: i32, %arg1: i32, %arg2: i32) -> (i32, i32) {
    %c0_i32 = arith.constant 0 : i32
    return %arg0, %arg1 : i32, i32
  }
}

</mosaic_0001>

<llo_original>
// kernel: tpu_custom_call.1
$region0: #{tpu_custom_call.1}
  #allocation0 [shape = 'u32[]', space=smem, size = 0x4, offset = 0x4, fixed_abs, tag = 'smem constant byte address 0x4 - core index']
  #allocation1 [shape = 'u32[144,128]{1,0:T(1,128)}', space=vmem, size = 0x12000, scoped, tag = 'internal scratch']
  %s0 = inlined_call_operand.hbm [shape: bf16[8192,128], index: 0, kind: input, shape index: {}]
  %s1 = inlined_call_operand.hbm [shape: bf16[128,128], index: 1, kind: input, shape index: {}]
  %s2 = inlined_call_operand.hbm [shape: f32[1,128], index: 2, kind: input, shape index: {}]
  %s3 = inlined_call_operand.hbm [shape: f32[1,128], index: 3, kind: input, shape index: {}]
  %s4 = inlined_call_operand.hbm [shape: f32[8192,128], index: 4, kind: output, shape index: {}]
  %s5 = sld [smem:[#allocation0]]
  $region73: #{tpu_custom_call.1} parent=0
    _
  %s7 = ssub.s32 1, %s5
  %s8 = scalar_select 0, %s7, %s5
  $region1: #{tpu_custom_call.1} parent=0
    #allocation2 [shape = 'u8[262144]{0}', space=vmem, size = 0x40000, scoped, tag = 'input window, operand 0']
    #allocation3 [shape = 's32[2]{0}', space=sflag, size = 0x8, scoped, tag = 'scoped memory for tpu_custom_call.1']
    #allocation4 [shape = 's32[2]{0}', space=sflag, size = 0x8, scoped, tag = 'scoped memory for tpu_custom_call.1']
    #allocation5 [shape = 'u8[32768]{0}', space=vmem, size = 0x8000, scoped, tag = 'input window, operand 1, single buffered']
    #allocation6 [shape = 's32[1]{0}', space=sflag, size = 0x4, scoped, tag = 'scoped memory for tpu_custom_call.1']
    #allocation7 [shape = 'u8[512]{0}', space=vmem, size = 0x400, scoped, tag = 'input window, operand 2, single buffered']
    #allocation8 [shape = 'u8[512]{0}', space=vmem, size = 0x400, scoped, tag = 'input window, operand 3, single buffered']
    #allocation9 [shape = 's32[1]{0}', space=sflag, size = 0x4, scoped, tag = 'scoped memory for tpu_custom_call.1']
    #allocation10 [shape = 'u8[524288]{0}', space=vmem, size = 0x80000, scoped, tag = 'output window, operand 0']
    %9 = vsyncpa [#allocation3], 0
    %s10 = scalar_lea.sflag [#allocation3], 1
    %11 = vsyncpa %s10, 0
    %12 = vsyncpa [#allocation6], 0
    %13 = vsyncpa [#allocation9], 0
    %14 = vsyncpa [#allocation4], 0
    %s15 = scalar_lea.sflag [#allocation4], 1
    %16 = vsyncpa %s15, 0
    loop: start=0, step=1, limit=18
    $region2: #{tpu_custom_call.1} parent=1 // loop_pre_header
      _
    $region3: #{tpu_custom_call.1} parent=1 // loop_header
      %s18 = sphi 0, %s22
      %p19 = scmp.ge.s32.totalorder %s18, 18
      %s25 = sphi 0, %s44
      %s26 = sphi 0, %s40
      %s27 = sphi 0, %s36
      %s28 = sphi 0, %s25
      %s29 = sphi 0, %s26
      %s30 = sphi 0, %s27
      %s31 = sphi 0, %s28
      %s32 = sphi 0, %s29
      %s33 = sphi 0, %s30
      %s49 = sphi 0, %s51
      %s52 = sphi 0, %s49
      %s53 = sphi 0, %s52
      %s69 = sphi 0, %s53
      %s77 = sphi 0, %s79
      %s80 = sphi 0, %s77
      %s81 = sphi 0, %s80
      %s97 = sphi 0, %s81
      %s103 = sphi 0, %s105
      %s106 = sphi 0, %s103
      %s107 = sphi 0, %s106
      %s123 = sphi 0, %s107
      %s129 = sphi 0, %s131
      %s132 = sphi 0, %s129
      %s133 = sphi 0, %s132
      %s149 = sphi 0, %s133
      %s157 = sphi 0, %s159
      %s160 = sphi 0, %s157
      %s161 = sphi 0, %s160
      %s177 = sphi 0, %s161
    $region4: #{tpu_custom_call.1} parent=1 // loop_header_branch
      %21 = sbr.rel (%p19) target = $region8
    $region5: #{tpu_custom_call.1} parent=1 // loop_body
      %s23 = ssub.s32 %s18, 1
      %s24 = ssub.s32 %s18, 2
      %s34 = sadd.s32 1, %s27
      %p35 = scmp.ge.s32.totalorder %s34, 1
      %s36 = scalar_select %p35, 0, %s34
      %s37 = sadd.s32 1, %s26
      %s38 = scalar_select %p35, %s37, %s26
      %p39 = scmp.ge.s32.totalorder %s38, 1
      %s40 = scalar_select %p39, 0, %s38
      %s41 = sadd.s32 1, %s25
      %s42 = scalar_select %p39, %s41, %s25
      %p43 = scmp.ge.s32.totalorder %s42, 16
      %s44 = scalar_select %p43, 0, %s42
      %s45 = ssub.s32 %s25, %s44
      %s46 = ssub.s32 %s27, %s36
      %s47 = sor.u32 %s45, %s46
      %p48 = scmp.eq.s32.totalorder %s47, 0
      %s50 = sadd.s32 %s49, 1
      %s51 = scalar_select %p48, %s49, %s50
      %p54 = pneg %p48
      %p55 = scmp.eq.s32.totalorder %s18, 15
      %p56 = por %p54, %p55
      %p57 = scmp.ne.s32.totalorder %s49, %s52
      %p58 = scmp.eq.s32.totalorder %s18, 0
      %p59 = por %p57, %p58
      %p60 = scmp.ne.s32.totalorder %s49, %s52
      %p61 = scmp.eq.s32.totalorder %s23, 15
      %p62 = por %p60, %p61
      %p63 = scmp.ne.s32.totalorder %s52, %s53
      %p64 = scmp.eq.s32.totalorder %s23, 0
      %p65 = por %p63, %p64
      %p66 = scmp.ne.s32.totalorder %s52, %s53
      %p67 = scmp.eq.s32.totalorder %s24, 15
      %p68 = por %p66, %p67
      %p70 = scmp.ne.s32.totalorder %s53, %s69
      %p71 = scmp.eq.s32.totalorder %s24, 0
      %p72 = por %p70, %p71
      %s73 = ssub.s32 %s27, %s36
      %s74 = ssub.s32 %s26, %s40
      %s75 = sor.u32 %s73, %s74
      %p76 = scmp.eq.s32.totalorder %s75, 0
      %s78 = sadd.s32 %s77, 1
      %s79 = scalar_select %p76, %s77, %s78
      %p82 = pneg %p76
      %p83 = scmp.eq.s32.totalorder %s18, 15
      %p84 = por %p82, %p83
      %p85 = scmp.ne.s32.totalorder %s77, %s80
      %p86 = scmp.eq.s32.totalorder %s18, 0
      %p87 = por %p85, %p86
      %p88 = scmp.ne.s32.totalorder %s77, %s80
      %p89 = scmp.eq.s32.totalorder %s23, 15
      %p90 = por %p88, %p89
      %p91 = scmp.ne.s32.totalorder %s80, %s81
      %p92 = scmp.eq.s32.totalorder %s23, 0
      %p93 = por %p91, %p92
      %p94 = scmp.ne.s32.totalorder %s80, %s81
      %p95 = scmp.eq.s32.totalorder %s24, 15
      %p96 = por %p94, %p95
      %p98 = scmp.ne.s32.totalorder %s81, %s97
      %p99 = scmp.eq.s32.totalorder %s24, 0
      %p100 = por %p98, %p99
      %s101 = ssub.s32 %s26, %s40
      %p102 = scmp.eq.s32.totalorder %s101, 0
      %s104 = sadd.s32 %s103, 1
      %s105 = scalar_select %p102, %s103, %s104
      %p108 = pneg %p102
      %p109 = scmp.eq.s32.totalorder %s18, 15
      %p110 = por %p108, %p109
      %p111 = scmp.ne.s32.totalorder %s103, %s106
      %p112 = scmp.eq.s32.totalorder %s18, 0
      %p113 = por %p111, %p112
      %p114 = scmp.ne.s32.totalorder %s103, %s106
      %p115 = scmp.eq.s32.totalorder %s23, 15
      %p116 = por %p114, %p115
      %p117 = scmp.ne.s32.totalorder %s106, %s107
      %p118 = scmp.eq.s32.totalorder %s23, 0
      %p119 = por %p117, %p118
      %p120 = scmp.ne.s32.totalorder %s106, %s107
      %p121 = scmp.eq.s32.totalorder %s24, 15
      %p122 = por %p120, %p121
      %p124 = scmp.ne.s32.totalorder %s107, %s123
      %p125 = scmp.eq.s32.totalorder %s24, 0
      %p126 = por %p124, %p125
      %s127 = ssub.s32 %s26, %s40
      %p128 = scmp.eq.s32.totalorder %s127, 0
      %s130 = sadd.s32 %s129, 1
      %s131 = scalar_select %p128, %s129, %s130
      %p134 = pneg %p128
      %p135 = scmp.eq.s32.totalorder %s18, 15
      %p136 = por %p134, %p135
      %p137 = scmp.ne.s32.totalorder %s129, %s132
      %p138 = scmp.eq.s32.totalorder %s18, 0
      %p139 = por %p137, %p138
      %p140 = scmp.ne.s32.totalorder %s129, %s132
      %p141 = scmp.eq.s32.totalorder %s23, 15
      %p142 = por %p140, %p141
      %p143 = scmp.ne.s32.totalorder %s132, %s133
      %p144 = scmp.eq.s32.totalorder %s23, 0
      %p145 = por %p143, %p144
      %p146 = scmp.ne.s32.totalorder %s132, %s133
      %p147 = scmp.eq.s32.totalorder %s24, 15
      %p148 = por %p146, %p147
      %p150 = scmp.ne.s32.totalorder %s133, %s149
      %p151 = scmp.eq.s32.totalorder %s24, 0
      %p152 = por %p150, %p151
      %s153 = ssub.s32 %s25, %s44
      %s154 = ssub.s32 %s26, %s40
      %s155 = sor.u32 %s153, %s154
      %p156 = scmp.eq.s32.totalorder %s155, 0
      %s158 = sadd.s32 %s157, 1
      %s159 = scalar_select %p156, %s157, %s158
      %p162 = pneg %p156
      %p163 = scmp.eq.s32.totalorder %s18, 15
      %p164 = por %p162, %p163
      %p165 = scmp.ne.s32.totalorder %s157, %s160
      %p166 = scmp.eq.s32.totalorder %s18, 0
      %p167 = por %p165, %p166
      %p168 = scmp.ne.s32.totalorder %s157, %s160
      %p169 = scmp.eq.s32.totalorder %s23, 15
      %p170 = por %p168, %p169
      %p171 = scmp.ne.s32.totalorder %s160, %s161
      %p172 = scmp.eq.s32.totalorder %s23, 0
      %p173 = por %p171, %p172
      %p174 = scmp.ne.s32.totalorder %s160, %s161
      %p175 = scmp.eq.s32.totalorder %s24, 15
      %p176 = por %p174, %p175
      %p178 = scmp.ne.s32.totalorder %s161, %s177
      %p179 = scmp.eq.s32.totalorder %s24, 0
      %p180 = por %p178, %p179
      %p181 = scmp.le.s32.totalorder 1, %s18
      %p182 = scmp.lt.s32.totalorder %s18, 17
      %p183 = pnand %p181, %p182
      %p184 = pneg %p183
      // Predicated region
      $region9: #{tpu_custom_call.1} parent=5 // pred_check
        _
      $region10: #{tpu_custom_call.1} parent=5 // pred_check_branch
        %186 = sbr.rel (%p183) target = $region12
      $region11: #{tpu_custom_call.1} parent=5 // pred_region
        %s187 = ssub.s32 %s18, 1
        // Predicated region
        $region13: #{tpu_custom_call.1} parent=11 // pred_check
          %p188 = pneg %p93
        $region14: #{tpu_custom_call.1} parent=11 // pred_check_branch
          %190 = sbr.rel (%p188) target = $region16
        $region15: #{tpu_custom_call.1} parent=11 // pred_region
          %s191 = smul.u32 16, %s30
          %s193 = ssub.s32 1024, 1024
          %194 = vsyncadd [#allocation6], %s193
          %s195 = sadd.s32 %s29, %s191
          %s196 = smul.addr %s195, 64
          %s197 = scalar_lea.hbm %s1, %s196
          %s198 = sshll.u32 [#allocation5], 4
          %s199 = int_to_ptr.vmem [resolvable:$true] %s198
          %204 = dma.hbm_to_vmem [thread:$0]  %s197, 1024, %s199, [#allocation6], 64, 64, 4
        $region16: #{tpu_custom_call.1} parent=11 // pred_fallthru
          _
        // Predicated region
        $region17: #{tpu_custom_call.1} parent=11 // pred_check
          %p205 = pneg %p119
        $region18: #{tpu_custom_call.1} parent=11 // pred_check_branch
          %207 = sbr.rel (%p205) target = $region20
        $region19: #{tpu_custom_call.1} parent=11 // pred_region
          %s209 = ssub.s32 16, 16
          %210 = vsyncadd [#allocation6], %s209
          %s211 = smul.addr %s29, 16
          %s212 = scalar_lea.hbm %s2, %s211
          %s214 = sshll.u32 [#allocation7], 4
          %s215 = int_to_ptr.vmem [resolvable:$true] %s214
          %217 = dma.hbm_to_vmem [thread:$0]  %s212, 16, %s215, [#allocation6]
        $region20: #{tpu_custom_call.1} parent=11 // pred_fallthru
          _
        // Predicated region
        $region21: #{tpu_custom_call.1} parent=11 // pred_check
          %p218 = pneg %p145
        $region22: #{tpu_custom_call.1} parent=11 // pred_check_branch
          %220 = sbr.rel (%p218) target = $region24
        $region23: #{tpu_custom_call.1} parent=11 // pred_region
          %s222 = ssub.s32 16, 16
          %223 = vsyncadd [#allocation9], %s222
          %s224 = smul.addr %s29, 16
          %s225 = scalar_lea.hbm %s3, %s224
          %s227 = sshll.u32 [#allocation8], 4
          %s228 = int_to_ptr.vmem [resolvable:$true] %s227
          %230 = dma.hbm_to_vmem [thread:$0]  %s225, 16, %s228, [#allocation9]
        $region24: #{tpu_custom_call.1} parent=11 // pred_fallthru
          _
      $region12: #{tpu_custom_call.1} parent=5 // pred_fallthru
        _
      %p231 = scmp.lt.s32.totalorder %s18, 16
      // Predicated region
      $region25: #{tpu_custom_call.1} parent=5 // pred_check
        %p232 = pneg %p231
      $region26: #{tpu_custom_call.1} parent=5 // pred_check_branch
        %234 = sbr.rel (%p232) target = $region28
      $region27: #{tpu_custom_call.1} parent=5 // pred_region
        // Predicated region
        $region29: #{tpu_custom_call.1} parent=27 // pred_check
          %p235 = pneg %p59
        $region30: #{tpu_custom_call.1} parent=27 // pred_check_branch
          %237 = sbr.rel (%p235) target = $region32
        $region31: #{tpu_custom_call.1} parent=27 // pred_region
          %s238 = sand.u32 %s49, 1
          %s239 = scalar_lea.sflag [#allocation3], %s238
          %s240 = sand.u32 %s49, 1
          %s241 = smul.addr %s240, 256
          %s242 = scalar_lea.vmem [#allocation2], %s241
          %s243 = smul.u32 64, %s25
          %s245 = ssub.s32 4096, 4096
          %246 = vsyncadd %s239, %s245
          %s247 = sadd.s32 %s27, %s243
          %s248 = smul.addr %s247, 64
          %s249 = scalar_lea.hbm %s0, %s248
          %s250 = sshll.u32 %s242, 4
          %s251 = int_to_ptr.vmem [resolvable:$true] %s250
          %256 = dma.hbm_to_vmem [thread:$0]  %s249, 4096, %s251, %s239, 64, 64, 4
        $region32: #{tpu_custom_call.1} parent=27 // pred_fallthru
          _
      $region28: #{tpu_custom_call.1} parent=5 // pred_fallthru
        _
      %p257 = scmp.le.s32.totalorder 1, %s18
      %p258 = scmp.lt.s32.totalorder %s18, 17
      %p259 = pnand %p257, %p258
      %p260 = pneg %p259
      // Predicated region
      $region33: #{tpu_custom_call.1} parent=5 // pred_check
        _
      $region34: #{tpu_custom_call.1} parent=5 // pred_check_branch
        %262 = sbr.rel (%p259) target = $region36
      $region35: #{tpu_custom_call.1} parent=5 // pred_region
        %s263 = ssub.s32 %s18, 1
        %s264 = sand.u32 %s52, 1
        %s265 = scalar_lea.sflag [#allocation3], %s264
        %s266 = sand.u32 %s52, 1
        %s267 = smul.addr %s266, 256
        %s268 = scalar_lea.vmem [#allocation2], %s267
        // Predicated region
        $region37: #{tpu_custom_call.1} parent=35 // pred_check
          %p269 = pneg %p65
        $region38: #{tpu_custom_call.1} parent=35 // pred_check_branch
          %271 = sbr.rel (%p269) target = $region40
        $region39: #{tpu_custom_call.1} parent=35 // pred_region
          %272 = dma.done %s265, 4096
        $region40: #{tpu_custom_call.1} parent=35 // pred_fallthru
          _
        // Predicated region
        $region41: #{tpu_custom_call.1} parent=35 // pred_check
          %p273 = pneg %p93
        $region42: #{tpu_custom_call.1} parent=35 // pred_check_branch
          %275 = sbr.rel (%p273) target = $region44
        $region43: #{tpu_custom_call.1} parent=35 // pred_region
          %276 = dma.done [#allocation6], 1024
        $region44: #{tpu_custom_call.1} parent=35 // pred_fallthru
          _
        // Predicated region
        $region45: #{tpu_custom_call.1} parent=35 // pred_check
          %p277 = pneg %p119
        $region46: #{tpu_custom_call.1} parent=35 // pred_check_branch
          %279 = sbr.rel (%p277) target = $region48
        $region47: #{tpu_custom_call.1} parent=35 // pred_region
          %280 = dma.done [#allocation6], 16
        $region48: #{tpu_custom_call.1} parent=35 // pred_fallthru
          _
        // Predicated region
        $region49: #{tpu_custom_call.1} parent=35 // pred_check
          %p281 = pneg %p145
        $region50: #{tpu_custom_call.1} parent=35 // pred_check_branch
          %283 = sbr.rel (%p281) target = $region52
        $region51: #{tpu_custom_call.1} parent=35 // pred_region
          %284 = dma.done [#allocation9], 16
        $region52: #{tpu_custom_call.1} parent=35 // pred_fallthru
          _
        %s285 = sand.u32 %s52, 1
        %s286 = scalar_lea.sflag [#allocation3], %s285
        %s287 = sand.u32 %s52, 1
        %s288 = smul.addr %s287, 256
        %s289 = scalar_lea.vmem [#allocation2], %s288
        %p290 = pneg %p65
        %p291 = pneg %p62
        %p292 = pneg %p93
        %p293 = pneg %p90
        %p294 = pneg %p119
        %p295 = pneg %p116
        %p296 = pneg %p145
        %p297 = pneg %p142
        %p298 = pneg %p173
        %p299 = pneg %p170
        %s300 = sand.u32 %s160, 1
        %s301 = scalar_lea.sflag [#allocation4], %s300
        %s302 = sand.u32 %s160, 1
        %s303 = smul.addr %s302, 512
        %s304 = scalar_lea.vmem [#allocation10], %s303
        %s305 = smul.u32 64, %s28
        %s306 = smul.u32 16, %s30
        %s307 = smul.u32 64, %s28
        %p309 = scmp.eq.s32.totalorder %s30, 0
        // Predicated region
        $region53: #{tpu_custom_call.1} parent=35 // pred_check
          %p310 = pneg %p309
        $region54: #{tpu_custom_call.1} parent=35 // pred_check_branch
          %312 = sbr.rel (%p310) target = $region56
        $region55: #{tpu_custom_call.1} parent=35 // pred_region
          %313 = vst [vmem:[%s304] sm:$0xff] 0.0
          %314 = vst [vmem:[%s304 + $0x8] sm:$0xff] 0.0
          %315 = vst [vmem:[%s304 + $0x10] sm:$0xff] 0.0
          %316 = vst [vmem:[%s304 + $0x18] sm:$0xff] 0.0
          %317 = vst [vmem:[%s304 + $0x20] sm:$0xff] 0.0
          %318 = vst [vmem:[%s304 + $0x28] sm:$0xff] 0.0
          %319 = vst [vmem:[%s304 + $0x30] sm:$0xff] 0.0
          %320 = vst [vmem:[%s304 + $0x38] sm:$0xff] 0.0
          %321 = vst [vmem:[%s304 + $0x40] sm:$0xff] 0.0
          %322 = vst [vmem:[%s304 + $0x48] sm:$0xff] 0.0
          %323 = vst [vmem:[%s304 + $0x50] sm:$0xff] 0.0
          %324 = vst [vmem:[%s304 + $0x58] sm:$0xff] 0.0
          %325 = vst [vmem:[%s304 + $0x60] sm:$0xff] 0.0
          %326 = vst [vmem:[%s304 + $0x68] sm:$0xff] 0.0
          %327 = vst [vmem:[%s304 + $0x70] sm:$0xff] 0.0
          %328 = vst [vmem:[%s304 + $0x78] sm:$0xff] 0.0
          %329 = vst [vmem:[%s304 + $0x80] sm:$0xff] 0.0
          %330 = vst [vmem:[%s304 + $0x88] sm:$0xff] 0.0
          %331 = vst [vmem:[%s304 + $0x90] sm:$0xff] 0.0
          %332 = vst [vmem:[%s304 + $0x98] sm:$0xff] 0.0
          %333 = vst [vmem:[%s304 + $0xa0] sm:$0xff] 0.0
          %334 = vst [vmem:[%s304 + $0xa8] sm:$0xff] 0.0
          %335 = vst [vmem:[%s304 + $0xb0] sm:$0xff] 0.0
          %336 = vst [vmem:[%s304 + $0xb8] sm:$0xff] 0.0
          %337 = vst [vmem:[%s304 + $0xc0] sm:$0xff] 0.0
          %338 = vst [vmem:[%s304 + $0xc8] sm:$0xff] 0.0
          %339 = vst [vmem:[%s304 + $0xd0] sm:$0xff] 0.0
          %340 = vst [vmem:[%s304 + $0xd8] sm:$0xff] 0.0
          %341 = vst [vmem:[%s304 + $0xe0] sm:$0xff] 0.0
          %342 = vst [vmem:[%s304 + $0xe8] sm:$0xff] 0.0
          %343 = vst [vmem:[%s304 + $0xf0] sm:$0xff] 0.0
          %344 = vst [vmem:[%s304 + $0xf8] sm:$0xff] 0.0
          %345 = vst [vmem:[%s304 + $0x100] sm:$0xff] 0.0
          %346 = vst [vmem:[%s304 + $0x108] sm:$0xff] 0.0
          %347 = vst [vmem:[%s304 + $0x110] sm:$0xff] 0.0
          %348 = vst [vmem:[%s304 + $0x118] sm:$0xff] 0.0
          %349 = vst [vmem:[%s304 + $0x120] sm:$0xff] 0.0
          %350 = vst [vmem:[%s304 + $0x128] sm:$0xff] 0.0
          %351 = vst [vmem:[%s304 + $0x130] sm:$0xff] 0.0
          %352 = vst [vmem:[%s304 + $0x138] sm:$0xff] 0.0
          %353 = vst [vmem:[%s304 + $0x140] sm:$0xff] 0.0
          %354 = vst [vmem:[%s304 + $0x148] sm:$0xff] 0.0
          %355 = vst [vmem:[%s304 + $0x150] sm:$0xff] 0.0
          %356 = vst [vmem:[%s304 + $0x158] sm:$0xff] 0.0
          %357 = vst [vmem:[%s304 + $0x160] sm:$0xff] 0.0
          %358 = vst [vmem:[%s304 + $0x168] sm:$0xff] 0.0
          %359 = vst [vmem:[%s304 + $0x170] sm:$0xff] 0.0
          %360 = vst [vmem:[%s304 + $0x178] sm:$0xff] 0.0
          %361 = vst [vmem:[%s304 + $0x180] sm:$0xff] 0.0
          %362 = vst [vmem:[%s304 + $0x188] sm:$0xff] 0.0
          %363 = vst [vmem:[%s304 + $0x190] sm:$0xff] 0.0
          %364 = vst [vmem:[%s304 + $0x198] sm:$0xff] 0.0
          %365 = vst [vmem:[%s304 + $0x1a0] sm:$0xff] 0.0
          %366 = vst [vmem:[%s304 + $0x1a8] sm:$0xff] 0.0
          %367 = vst [vmem:[%s304 + $0x1b0] sm:$0xff] 0.0
          %368 = vst [vmem:[%s304 + $0x1b8] sm:$0xff] 0.0
          %369 = vst [vmem:[%s304 + $0x1c0] sm:$0xff] 0.0
          %370 = vst [vmem:[%s304 + $0x1c8] sm:$0xff] 0.0
          %371 = vst [vmem:[%s304 + $0x1d0] sm:$0xff] 0.0
          %372 = vst [vmem:[%s304 + $0x1d8] sm:$0xff] 0.0
          %373 = vst [vmem:[%s304 + $0x1e0] sm:$0xff] 0.0
          %374 = vst [vmem:[%s304 + $0x1e8] sm:$0xff] 0.0
          %375 = vst [vmem:[%s304 + $0x1f0] sm:$0xff] 0.0
          %376 = vst [vmem:[%s304 + $0x1f8] sm:$0xff] 0.0
        $region56: #{tpu_custom_call.1} parent=35 // pred_fallthru
          _
        %v377 = vld [vmem:[%s304] sm:$0xff]
        %v378 = vld [vmem:[%s304 + $0x8] sm:$0xff]
        %v379 = vld [vmem:[%s304 + $0x10] sm:$0xff]
        %v380 = vld [vmem:[%s304 + $0x18] sm:$0xff]
        %v381 = vld [vmem:[%s304 + $0x20] sm:$0xff]
        %v382 = vld [vmem:[%s304 + $0x28] sm:$0xff]
        %v383 = vld [vmem:[%s304 + $0x30] sm:$0xff]
        %v384 = vld [vmem:[%s304 + $0x38] sm:$0xff]
        %v385 = vld [vmem:[%s304 + $0x40] sm:$0xff]
        %v386 = vld [vmem:[%s304 + $0x48] sm:$0xff]
        %v387 = vld [vmem:[%s304 + $0x50] sm:$0xff]
        %v388 = vld [vmem:[%s304 + $0x58] sm:$0xff]
        %v389 = vld [vmem:[%s304 + $0x60] sm:$0xff]
        %v390 = vld [vmem:[%s304 + $0x68] sm:$0xff]
        %v391 = vld [vmem:[%s304 + $0x70] sm:$0xff]
        %v392 = vld [vmem:[%s304 + $0x78] sm:$0xff]
        %v393 = vld [vmem:[%s304 + $0x80] sm:$0xff]
        %v394 = vld [vmem:[%s304 + $0x88] sm:$0xff]
        %v395 = vld [vmem:[%s304 + $0x90] sm:$0xff]
        %v396 = vld [vmem:[%s304 + $0x98] sm:$0xff]
        %v397 = vld [vmem:[%s304 + $0xa0] sm:$0xff]
        %v398 = vld [vmem:[%s304 + $0xa8] sm:$0xff]
        %v399 = vld [vmem:[%s304 + $0xb0] sm:$0xff]
        %v400 = vld [vmem:[%s304 + $0xb8] sm:$0xff]
        %v401 = vld [vmem:[%s304 + $0xc0] sm:$0xff]
        %v402 = vld [vmem:[%s304 + $0xc8] sm:$0xff]
        %v403 = vld [vmem:[%s304 + $0xd0] sm:$0xff]
        %v404 = vld [vmem:[%s304 + $0xd8] sm:$0xff]
        %v405 = vld [vmem:[%s304 + $0xe0] sm:$0xff]
        %v406 = vld [vmem:[%s304 + $0xe8] sm:$0xff]
        %v407 = vld [vmem:[%s304 + $0xf0] sm:$0xff]
        %v408 = vld [vmem:[%s304 + $0xf8] sm:$0xff]
        %v409 = vld [vmem:[%s304 + $0x100] sm:$0xff]
        %v410 = vld [vmem:[%s304 + $0x108] sm:$0xff]
        %v411 = vld [vmem:[%s304 + $0x110] sm:$0xff]
        %v412 = vld [vmem:[%s304 + $0x118] sm:$0xff]
        %v413 = vld [vmem:[%s304 + $0x120] sm:$0xff]
        %v414 = vld [vmem:[%s304 + $0x128] sm:$0xff]
        %v415 = vld [vmem:[%s304 + $0x130] sm:$0xff]
        %v416 = vld [vmem:[%s304 + $0x138] sm:$0xff]
        %v417 = vld [vmem:[%s304 + $0x140] sm:$0xff]
        %v418 = vld [vmem:[%s304 + $0x148] sm:$0xff]
        %v419 = vld [vmem:[%s304 + $0x150] sm:$0xff]
        %v420 = vld [vmem:[%s304 + $0x158] sm:$0xff]
        %v421 = vld [vmem:[%s304 + $0x160] sm:$0xff]
        %v422 = vld [vmem:[%s304 + $0x168] sm:$0xff]
        %v423 = vld [vmem:[%s304 + $0x170] sm:$0xff]
        %v424 = vld [vmem:[%s304 + $0x178] sm:$0xff]
        %v425 = vld [vmem:[%s304 + $0x180] sm:$0xff]
        %v426 = vld [vmem:[%s304 + $0x188] sm:$0xff]
        %v427 = vld [vmem:[%s304 + $0x190] sm:$0xff]
        %v428 = vld [vmem:[%s304 + $0x198] sm:$0xff]
        %v429 = vld [vmem:[%s304 + $0x1a0] sm:$0xff]
        %v430 = vld [vmem:[%s304 + $0x1a8] sm:$0xff]
        %v431 = vld [vmem:[%s304 + $0x1b0] sm:$0xff]
        %v432 = vld [vmem:[%s304 + $0x1b8] sm:$0xff]
        %v433 = vld [vmem:[%s304 + $0x1c0] sm:$0xff]
        %v434 = vld [vmem:[%s304 + $0x1c8] sm:$0xff]
        %v435 = vld [vmem:[%s304 + $0x1d0] sm:$0xff]
        %v436 = vld [vmem:[%s304 + $0x1d8] sm:$0xff]
        %v437 = vld [vmem:[%s304 + $0x1e0] sm:$0xff]
        %v438 = vld [vmem:[%s304 + $0x1e8] sm:$0xff]
        %v439 = vld [vmem:[%s304 + $0x1f0] sm:$0xff]
        %v440 = vld [vmem:[%s304 + $0x1f8] sm:$0xff]
        %v441 = vld [vmem:[%s268] sm:$0xf]
        %v442 = vld [vmem:[%s268 + $0x4] sm:$0xf]
        %v443 = vld [vmem:[%s268 + $0x8] sm:$0xf]
        %v444 = vld [vmem:[%s268 + $0xc] sm:$0xf]
        %v445 = vld [vmem:[%s268 + $0x10] sm:$0xf]
        %v446 = vld [vmem:[%s268 + $0x14] sm:$0xf]
        %v447 = vld [vmem:[%s268 + $0x18] sm:$0xf]
        %v448 = vld [vmem:[%s268 + $0x1c] sm:$0xf]
        %v449 = vld [vmem:[%s268 + $0x20] sm:$0xf]
        %v450 = vld [vmem:[%s268 + $0x24] sm:$0xf]
        %v451 = vld [vmem:[%s268 + $0x28] sm:$0xf]
        %v452 = vld [vmem:[%s268 + $0x2c] sm:$0xf]
        %v453 = vld [vmem:[%s268 + $0x30] sm:$0xf]
        %v454 = vld [vmem:[%s268 + $0x34] sm:$0xf]
        %v455 = vld [vmem:[%s268 + $0x38] sm:$0xf]
        %v456 = vld [vmem:[%s268 + $0x3c] sm:$0xf]
        %v457 = vld [vmem:[%s268 + $0x40] sm:$0xf]
        %v458 = vld [vmem:[%s268 + $0x44] sm:$0xf]
        %v459 = vld [vmem:[%s268 + $0x48] sm:$0xf]
        %v460 = vld [vmem:[%s268 + $0x4c] sm:$0xf]
        %v461 = vld [vmem:[%s268 + $0x50] sm:$0xf]
        %v462 = vld [vmem:[%s268 + $0x54] sm:$0xf]
        %v463 = vld [vmem:[%s268 + $0x58] sm:$0xf]
        %v464 = vld [vmem:[%s268 + $0x5c] sm:$0xf]
        %v465 = vld [vmem:[%s268 + $0x60] sm:$0xf]
        %v466 = vld [vmem:[%s268 + $0x64] sm:$0xf]
        %v467 = vld [vmem:[%s268 + $0x68] sm:$0xf]
        %v468 = vld [vmem:[%s268 + $0x6c] sm:$0xf]
        %v469 = vld [vmem:[%s268 + $0x70] sm:$0xf]
        %v470 = vld [vmem:[%s268 + $0x74] sm:$0xf]
        %v471 = vld [vmem:[%s268 + $0x78] sm:$0xf]
        %v472 = vld [vmem:[%s268 + $0x7c] sm:$0xf]
        %v473 = vld [vmem:[%s268 + $0x80] sm:$0xf]
        %v474 = vld [vmem:[%s268 + $0x84] sm:$0xf]
        %v475 = vld [vmem:[%s268 + $0x88] sm:$0xf]
        %v476 = vld [vmem:[%s268 + $0x8c] sm:$0xf]
        %v477 = vld [vmem:[%s268 + $0x90] sm:$0xf]
        %v478 = vld [vmem:[%s268 + $0x94] sm:$0xf]
        %v479 = vld [vmem:[%s268 + $0x98] sm:$0xf]
        %v480 = vld [vmem:[%s268 + $0x9c] sm:$0xf]
        %v481 = vld [vmem:[%s268 + $0xa0] sm:$0xf]
        %v482 = vld [vmem:[%s268 + $0xa4] sm:$0xf]
        %v483 = vld [vmem:[%s268 + $0xa8] sm:$0xf]
        %v484 = vld [vmem:[%s268 + $0xac] sm:$0xf]
        %v485 = vld [vmem:[%s268 + $0xb0] sm:$0xf]
        %v486 = vld [vmem:[%s268 + $0xb4] sm:$0xf]
        %v487 = vld [vmem:[%s268 + $0xb8] sm:$0xf]
        %v488 = vld [vmem:[%s268 + $0xbc] sm:$0xf]
        %v489 = vld [vmem:[%s268 + $0xc0] sm:$0xf]
        %v490 = vld [vmem:[%s268 + $0xc4] sm:$0xf]
        %v491 = vld [vmem:[%s268 + $0xc8] sm:$0xf]
        %v492 = vld [vmem:[%s268 + $0xcc] sm:$0xf]
        %v493 = vld [vmem:[%s268 + $0xd0] sm:$0xf]
        %v494 = vld [vmem:[%s268 + $0xd4] sm:$0xf]
        %v495 = vld [vmem:[%s268 + $0xd8] sm:$0xf]
        %v496 = vld [vmem:[%s268 + $0xdc] sm:$0xf]
        %v497 = vld [vmem:[%s268 + $0xe0] sm:$0xf]
        %v498 = vld [vmem:[%s268 + $0xe4] sm:$0xf]
        %v499 = vld [vmem:[%s268 + $0xe8] sm:$0xf]
        %v500 = vld [vmem:[%s268 + $0xec] sm:$0xf]
        %v501 = vld [vmem:[%s268 + $0xf0] sm:$0xf]
        %v502 = vld [vmem:[%s268 + $0xf4] sm:$0xf]
        %v503 = vld [vmem:[%s268 + $0xf8] sm:$0xf]
        %v504 = vld [vmem:[%s268 + $0xfc] sm:$0xf]
        %v505 = vld [vmem:[#allocation5] sm:$0xf]
        %v506 = vld [vmem:[#allocation5 + $0x4] sm:$0xf]
        %v507 = vld [vmem:[#allocation5 + $0x8] sm:$0xf]
        %v508 = vld [vmem:[#allocation5 + $0xc] sm:$0xf]
        %v509 = vld [vmem:[#allocation5 + $0x10] sm:$0xf]
        %v510 = vld [vmem:[#allocation5 + $0x14] sm:$0xf]
        %v511 = vld [vmem:[#allocation5 + $0x18] sm:$0xf]
        %v512 = vld [vmem:[#allocation5 + $0x1c] sm:$0xf]
        %v513 = vld [vmem:[#allocation5 + $0x20] sm:$0xf]
        %v514 = vld [vmem:[#allocation5 + $0x24] sm:$0xf]
        %v515 = vld [vmem:[#allocation5 + $0x28] sm:$0xf]
        %v516 = vld [vmem:[#allocation5 + $0x2c] sm:$0xf]
        %v517 = vld [vmem:[#allocation5 + $0x30] sm:$0xf]
        %v518 = vld [vmem:[#allocation5 + $0x34] sm:$0xf]
        %v519 = vld [vmem:[#allocation5 + $0x38] sm:$0xf]
        %v520 = vld [vmem:[#allocation5 + $0x3c] sm:$0xf]
        %v585 = vunpack.c.l.b16 %v441
        %v586 = vunpack.c.l.b16 %v442
        %v587 = vunpack.c.l.b16 %v443
        %v588 = vunpack.c.l.b16 %v444
        %v589 = vunpack.c.l.b16 %v445
        %v590 = vunpack.c.l.b16 %v446
        %v591 = vunpack.c.l.b16 %v447
        %v592 = vunpack.c.l.b16 %v448
        %v593 = vunpack.c.l.b16 %v449
        %v594 = vunpack.c.l.b16 %v450
        %v595 = vunpack.c.l.b16 %v451
        %v596 = vunpack.c.l.b16 %v452
        %v597 = vunpack.c.l.b16 %v453
        %v598 = vunpack.c.l.b16 %v454
        %v599 = vunpack.c.l.b16 %v455
        %v600 = vunpack.c.l.b16 %v456
        %v601 = vunpack.c.l.b16 %v457
        %v602 = vunpack.c.l.b16 %v458
        %v603 = vunpack.c.l.b16 %v459
        %v604 = vunpack.c.l.b16 %v460
        %v605 = vunpack.c.l.b16 %v461
        %v606 = vunpack.c.l.b16 %v462
        %v607 = vunpack.c.l.b16 %v463
        %v608 = vunpack.c.l.b16 %v464
        %v609 = vunpack.c.l.b16 %v465
        %v610 = vunpack.c.l.b16 %v466
        %v611 = vunpack.c.l.b16 %v467
        %v612 = vunpack.c.l.b16 %v468
        %v613 = vunpack.c.l.b16 %v469
        %v614 = vunpack.c.l.b16 %v470
        %v615 = vunpack.c.l.b16 %v471
        %v616 = vunpack.c.l.b16 %v472
        %v617 = vunpack.c.l.b16 %v473
        %v618 = vunpack.c.l.b16 %v474
        %v619 = vunpack.c.l.b16 %v475
        %v620 = vunpack.c.l.b16 %v476
        %v621 = vunpack.c.l.b16 %v477
        %v622 = vunpack.c.l.b16 %v478
        %v623 = vunpack.c.l.b16 %v479
        %v624 = vunpack.c.l.b16 %v480
        %v625 = vunpack.c.l.b16 %v481
        %v626 = vunpack.c.l.b16 %v482
        %v627 = vunpack.c.l.b16 %v483
        %v628 = vunpack.c.l.b16 %v484
        %v629 = vunpack.c.l.b16 %v485
        %v630 = vunpack.c.l.b16 %v486
        %v631 = vunpack.c.l.b16 %v487
        %v632 = vunpack.c.l.b16 %v488
        %v633 = vunpack.c.l.b16 %v489
        %v634 = vunpack.c.l.b16 %v490
        %v635 = vunpack.c.l.b16 %v491
        %v636 = vunpack.c.l.b16 %v492
        %v637 = vunpack.c.l.b16 %v493
        %v638 = vunpack.c.l.b16 %v494
        %v639 = vunpack.c.l.b16 %v495
        %v640 = vunpack.c.l.b16 %v496
        %v641 = vunpack.c.l.b16 %v497
        %v642 = vunpack.c.l.b16 %v498
        %v643 = vunpack.c.l.b16 %v499
        %v644 = vunpack.c.l.b16 %v500
        %v645 = vunpack.c.l.b16 %v501
        %v646 = vunpack.c.l.b16 %v502
        %v647 = vunpack.c.l.b16 %v503
        %v648 = vunpack.c.l.b16 %v504
        %v649 = vpack.c.b16 %v586, %v585
        %v650 = vpack.c.b16 %v588, %v587
        %v651 = vpack.c.b16 %v590, %v589
        %v652 = vpack.c.b16 %v592, %v591
        %v653 = vpack.c.b16 %v594, %v593
        %v654 = vpack.c.b16 %v596, %v595
        %v655 = vpack.c.b16 %v598, %v597
        %v656 = vpack.c.b16 %v600, %v599
        %v657 = vpack.c.b16 %v602, %v601
        %v658 = vpack.c.b16 %v604, %v603
        %v659 = vpack.c.b16 %v606, %v605
        %v660 = vpack.c.b16 %v608, %v607
        %v661 = vpack.c.b16 %v610, %v609
        %v662 = vpack.c.b16 %v612, %v611
        %v663 = vpack.c.b16 %v614, %v613
        %v664 = vpack.c.b16 %v616, %v615
        %v665 = vpack.c.b16 %v618, %v617
        %v666 = vpack.c.b16 %v620, %v619
        %v667 = vpack.c.b16 %v622, %v621
        %v668 = vpack.c.b16 %v624, %v623
        %v669 = vpack.c.b16 %v626, %v625
        %v670 = vpack.c.b16 %v628, %v627
        %v671 = vpack.c.b16 %v630, %v629
        %v672 = vpack.c.b16 %v632, %v631
        %v673 = vpack.c.b16 %v634, %v633
        %v674 = vpack.c.b16 %v636, %v635
        %v675 = vpack.c.b16 %v638, %v637
        %v676 = vpack.c.b16 %v640, %v639
        %v677 = vpack.c.b16 %v642, %v641
        %v678 = vpack.c.b16 %v644, %v643
        %v679 = vpack.c.b16 %v646, %v645
        %v680 = vpack.c.b16 %v648, %v647
        %v729 = vunpack.c.l.b16 %v505
        %v730 = vunpack.c.l.b16 %v506
        %v731 = vunpack.c.l.b16 %v507
        %v732 = vunpack.c.l.b16 %v508
        %v733 = vunpack.c.l.b16 %v509
        %v734 = vunpack.c.l.b16 %v510
        %v735 = vunpack.c.l.b16 %v511
        %v736 = vunpack.c.l.b16 %v512
        %v737 = vunpack.c.l.b16 %v513
        %v738 = vunpack.c.l.b16 %v514
        %v739 = vunpack.c.l.b16 %v515
        %v740 = vunpack.c.l.b16 %v516
        %v741 = vunpack.c.l.b16 %v517
        %v742 = vunpack.c.l.b16 %v518
        %v743 = vunpack.c.l.b16 %v519
        %v744 = vunpack.c.l.b16 %v520
        %v745 = vpack.c.b16 %v730, %v729
        %v746 = vpack.c.b16 %v732, %v731
        %v747 = vpack.c.b16 %v734, %v733
        %v748 = vpack.c.b16 %v736, %v735
        %v749 = vpack.c.b16 %v738, %v737
        %v750 = vpack.c.b16 %v740, %v739
        %v751 = vpack.c.b16 %v742, %v741
        %v752 = vpack.c.b16 %v744, %v743
        %761 = vmatprep.subr.bf16.mxu0 0
        %762 = vmatpush1.bf16.msra.mxu0 %v752
        %763 = vmatprep.subr.bf16.mxu0 0
        %764 = vmatpush1.bf16.msra.mxu0 %v751
        %765 = vmatprep.subr.bf16.mxu0 0
        %766 = vmatpush1.bf16.msra.mxu0 %v750
        %767 = vmatprep.subr.bf16.mxu0 0
        %768 = vmatpush1.bf16.msra.mxu0 %v749
        %769 = vmatprep.subr.bf16.mxu0 0
        %770 = vmatpush1.bf16.msra.mxu0 %v748
        %771 = vmatprep.subr.bf16.mxu0 0
        %772 = vmatpush1.bf16.msra.mxu0 %v747
        %773 = vmatprep.subr.bf16.mxu0 0
        %774 = vmatpush1.bf16.msra.mxu0 %v746
        %775 = vmatprep.subr.bf16.mxu0 0
        %776 = vmatpush1.bf16.msra.mxu0 %v745
        %777 = vmatprep.subr.bf16.mxu0 0
        %778 = vmatpush2.bf16.msra.mxu0 0
        %779 = vmatprep.subr.bf16.mxu0 0
        %780 = vmatpush2.bf16.msra.mxu0 0
        %781 = vmatprep.subr.bf16.mxu0 0
        %782 = vmatpush2.bf16.msra.mxu0 0
        %783 = vmatprep.subr.bf16.mxu0 0
        %784 = vmatpush2.bf16.msra.mxu0 0
        %785 = vmatprep.subr.bf16.mxu0 0
        %786 = vmatpush2.bf16.msra.mxu0 0
        %787 = vmatprep.subr.bf16.mxu0 0
        %788 = vmatpush2.bf16.msra.mxu0 0
        %789 = vmatprep.subr.bf16.mxu0 0
        %790 = vmatpush2.bf16.msra.mxu0 0
        %791 = vmatprep.subr.bf16.mxu0 0
        %792 = vmatpush2.bf16.msra.mxu0 0
        %793 = vmatprep.mubr.bf16.mxu0 0
        %794 = vmatmul.mubr.bf16.gmra.mxu0 %v649
        %v795 = vpop.f32.mrf.mxu0
        %v796 = vadd.f32 0.0, %v795
        %v797 = vpop.f32.mrf.mxu0
        %v798 = vpop.f32.mrf.mxu0
        %v799 = vadd.f32 0.0, %v798
        %v800 = vpop.f32.mrf.mxu0
        %801 = vmatprep.mubr.bf16.mxu0 0
        %802 = vmatmul.mubr.bf16.gmra.mxu0 %v650
        %v803 = vpop.f32.mrf.mxu0
        %v804 = vadd.f32 0.0, %v803
        %v805 = vpop.f32.mrf.mxu0
        %v806 = vpop.f32.mrf.mxu0
        %v807 = vadd.f32 0.0, %v806
        %v808 = vpop.f32.mrf.mxu0
        %809 = vmatprep.mubr.bf16.mxu0 0
        %810 = vmatmul.mubr.bf16.gmra.mxu0 %v651
        %v811 = vpop.f32.mrf.mxu0
        %v812 = vadd.f32 0.0, %v811
        %v813 = vpop.f32.mrf.mxu0
        %v814 = vpop.f32.mrf.mxu0
        %v815 = vadd.f32 0.0, %v814
        %v816 = vpop.f32.mrf.mxu0
        %817 = vmatprep.mubr.bf16.mxu0 0
        %818 = vmatmul.mubr.bf16.gmra.mxu0 %v652
        %v819 = vpop.f32.mrf.mxu0
        %v820 = vadd.f32 0.0, %v819
        %v821 = vpop.f32.mrf.mxu0
        %v822 = vpop.f32.mrf.mxu0
        %v823 = vadd.f32 0.0, %v822
        %v824 = vpop.f32.mrf.mxu0
        %825 = vmatprep.mubr.bf16.mxu0 0
        %826 = vmatmul.mubr.bf16.gmra.mxu0 %v653
        %v827 = vpop.f32.mrf.mxu0
        %v828 = vadd.f32 0.0, %v827
        %v829 = vpop.f32.mrf.mxu0
        %v830 = vpop.f32.mrf.mxu0
        %v831 = vadd.f32 0.0, %v830
        %v832 = vpop.f32.mrf.mxu0
        %833 = vmatprep.mubr.bf16.mxu0 0
        %834 = vmatmul.mubr.bf16.gmra.mxu0 %v654
        %v835 = vpop.f32.mrf.mxu0
        %v836 = vadd.f32 0.0, %v835
        %v837 = vpop.f32.mrf.mxu0
        %v838 = vpop.f32.mrf.mxu0
        %v839 = vadd.f32 0.0, %v838
        %v840 = vpop.f32.mrf.mxu0
        %841 = vmatprep.mubr.bf16.mxu0 0
        %842 = vmatmul.mubr.bf16.gmra.mxu0 %v655
        %v843 = vpop.f32.mrf.mxu0
        %v844 = vadd.f32 0.0, %v843
        %v845 = vpop.f32.mrf.mxu0
        %v846 = vpop.f32.mrf.mxu0
        %v847 = vadd.f32 0.0, %v846
        %v848 = vpop.f32.mrf.mxu0
        %849 = vmatprep.mubr.bf16.mxu0 0
        %850 = vmatmul.mubr.bf16.gmra.mxu0 %v656
        %v851 = vpop.f32.mrf.mxu0
        %v852 = vadd.f32 0.0, %v851
        %v853 = vpop.f32.mrf.mxu0
        %v854 = vpop.f32.mrf.mxu0
        %v855 = vadd.f32 0.0, %v854
        %v856 = vpop.f32.mrf.mxu0
        %857 = vmatprep.mubr.bf16.mxu0 0
        %858 = vmatmul.mubr.bf16.gmra.mxu0 %v657
        %v859 = vpop.f32.mrf.mxu0
        %v860 = vadd.f32 0.0, %v859
        %v861 = vpop.f32.mrf.mxu0
        %v862 = vpop.f32.mrf.mxu0
        %v863 = vadd.f32 0.0, %v862
        %v864 = vpop.f32.mrf.mxu0
        %865 = vmatprep.mubr.bf16.mxu0 0
        %866 = vmatmul.mubr.bf16.gmra.mxu0 %v658
        %v867 = vpop.f32.mrf.mxu0
        %v868 = vadd.f32 0.0, %v867
        %v869 = vpop.f32.mrf.mxu0
        %v870 = vpop.f32.mrf.mxu0
        %v871 = vadd.f32 0.0, %v870
        %v872 = vpop.f32.mrf.mxu0
        %873 = vmatprep.mubr.bf16.mxu0 0
        %874 = vmatmul.mubr.bf16.gmra.mxu0 %v659
        %v875 = vpop.f32.mrf.mxu0
        %v876 = vadd.f32 0.0, %v875
        %v877 = vpop.f32.mrf.mxu0
        %v878 = vpop.f32.mrf.mxu0
        %v879 = vadd.f32 0.0, %v878
        %v880 = vpop.f32.mrf.mxu0
        %881 = vmatprep.mubr.bf16.mxu0 0
        %882 = vmatmul.mubr.bf16.gmra.mxu0 %v660
        %v883 = vpop.f32.mrf.mxu0
        %v884 = vadd.f32 0.0, %v883
        %v885 = vpop.f32.mrf.mxu0
        %v886 = vpop.f32.mrf.mxu0
        %v887 = vadd.f32 0.0, %v886
        %v888 = vpop.f32.mrf.mxu0
        %889 = vmatprep.mubr.bf16.mxu0 0
        %890 = vmatmul.mubr.bf16.gmra.mxu0 %v661
        %v891 = vpop.f32.mrf.mxu0
        %v892 = vadd.f32 0.0, %v891
        %v893 = vpop.f32.mrf.mxu0
        %v894 = vpop.f32.mrf.mxu0
        %v895 = vadd.f32 0.0, %v894
        %v896 = vpop.f32.mrf.mxu0
        %897 = vmatprep.mubr.bf16.mxu0 0
        %898 = vmatmul.mubr.bf16.gmra.mxu0 %v662
        %v899 = vpop.f32.mrf.mxu0
        %v900 = vadd.f32 0.0, %v899
        %v901 = vpop.f32.mrf.mxu0
        %v902 = vpop.f32.mrf.mxu0
        %v903 = vadd.f32 0.0, %v902
        %v904 = vpop.f32.mrf.mxu0
        %905 = vmatprep.mubr.bf16.mxu0 0
        %906 = vmatmul.mubr.bf16.gmra.mxu0 %v663
        %v907 = vpop.f32.mrf.mxu0
        %v908 = vadd.f32 0.0, %v907
        %v909 = vpop.f32.mrf.mxu0
        %v910 = vpop.f32.mrf.mxu0
        %v911 = vadd.f32 0.0, %v910
        %v912 = vpop.f32.mrf.mxu0
        %913 = vmatprep.mubr.bf16.mxu0 0
        %914 = vmatmul.mubr.bf16.gmra.mxu0 %v664
        %v915 = vpop.f32.mrf.mxu0
        %v916 = vadd.f32 0.0, %v915
        %v917 = vpop.f32.mrf.mxu0
        %v918 = vpop.f32.mrf.mxu0
        %v919 = vadd.f32 0.0, %v918
        %v920 = vpop.f32.mrf.mxu0
        %921 = vmatprep.mubr.bf16.mxu0 0
        %922 = vmatmul.mubr.bf16.gmra.mxu0 %v665
        %v923 = vpop.f32.mrf.mxu0
        %v924 = vadd.f32 0.0, %v923
        %v925 = vpop.f32.mrf.mxu0
        %v926 = vpop.f32.mrf.mxu0
        %v927 = vadd.f32 0.0, %v926
        %v928 = vpop.f32.mrf.mxu0
        %929 = vmatprep.mubr.bf16.mxu0 0
        %930 = vmatmul.mubr.bf16.gmra.mxu0 %v666
        %v931 = vpop.f32.mrf.mxu0
        %v932 = vadd.f32 0.0, %v931
        %v933 = vpop.f32.mrf.mxu0
        %v934 = vpop.f32.mrf.mxu0
        %v935 = vadd.f32 0.0, %v934
        %v936 = vpop.f32.mrf.mxu0
        %937 = vmatprep.mubr.bf16.mxu0 0
        %938 = vmatmul.mubr.bf16.gmra.mxu0 %v667
        %v939 = vpop.f32.mrf.mxu0
        %v940 = vadd.f32 0.0, %v939
        %v941 = vpop.f32.mrf.mxu0
        %v942 = vpop.f32.mrf.mxu0
        %v943 = vadd.f32 0.0, %v942
        %v944 = vpop.f32.mrf.mxu0
        %945 = vmatprep.mubr.bf16.mxu0 0
        %946 = vmatmul.mubr.bf16.gmra.mxu0 %v668
        %v947 = vpop.f32.mrf.mxu0
        %v948 = vadd.f32 0.0, %v947
        %v949 = vpop.f32.mrf.mxu0
        %v950 = vpop.f32.mrf.mxu0
        %v951 = vadd.f32 0.0, %v950
        %v952 = vpop.f32.mrf.mxu0
        %953 = vmatprep.mubr.bf16.mxu0 0
        %954 = vmatmul.mubr.bf16.gmra.mxu0 %v669
        %v955 = vpop.f32.mrf.mxu0
        %v956 = vadd.f32 0.0, %v955
        %v957 = vpop.f32.mrf.mxu0
        %v958 = vpop.f32.mrf.mxu0
        %v959 = vadd.f32 0.0, %v958
        %v960 = vpop.f32.mrf.mxu0
        %961 = vmatprep.mubr.bf16.mxu0 0
        %962 = vmatmul.mubr.bf16.gmra.mxu0 %v670
        %v963 = vpop.f32.mrf.mxu0
        %v964 = vadd.f32 0.0, %v963
        %v965 = vpop.f32.mrf.mxu0
        %v966 = vpop.f32.mrf.mxu0
        %v967 = vadd.f32 0.0, %v966
        %v968 = vpop.f32.mrf.mxu0
        %969 = vmatprep.mubr.bf16.mxu0 0
        %970 = vmatmul.mubr.bf16.gmra.mxu0 %v671
        %v971 = vpop.f32.mrf.mxu0
        %v972 = vadd.f32 0.0, %v971
        %v973 = vpop.f32.mrf.mxu0
        %v974 = vpop.f32.mrf.mxu0
        %v975 = vadd.f32 0.0, %v974
        %v976 = vpop.f32.mrf.mxu0
        %977 = vmatprep.mubr.bf16.mxu0 0
        %978 = vmatmul.mubr.bf16.gmra.mxu0 %v672
        %v979 = vpop.f32.mrf.mxu0
        %v980 = vadd.f32 0.0, %v979
        %v981 = vpop.f32.mrf.mxu0
        %v982 = vpop.f32.mrf.mxu0
        %v983 = vadd.f32 0.0, %v982
        %v984 = vpop.f32.mrf.mxu0
        %985 = vmatprep.mubr.bf16.mxu0 0
        %986 = vmatmul.mubr.bf16.gmra.mxu0 %v673
        %v987 = vpop.f32.mrf.mxu0
        %v988 = vadd.f32 0.0, %v987
        %v989 = vpop.f32.mrf.mxu0
        %v990 = vpop.f32.mrf.mxu0
        %v991 = vadd.f32 0.0, %v990
        %v992 = vpop.f32.mrf.mxu0
        %993 = vmatprep.mubr.bf16.mxu0 0
        %994 = vmatmul.mubr.bf16.gmra.mxu0 %v674
        %v995 = vpop.f32.mrf.mxu0
        %v996 = vadd.f32 0.0, %v995
        %v997 = vpop.f32.mrf.mxu0
        %v998 = vpop.f32.mrf.mxu0
        %v999 = vadd.f32 0.0, %v998
        %v1000 = vpop.f32.mrf.mxu0
        %1001 = vmatprep.mubr.bf16.mxu0 0
        %1002 = vmatmul.mubr.bf16.gmra.mxu0 %v675
        %v1003 = vpop.f32.mrf.mxu0
        %v1004 = vadd.f32 0.0, %v1003
        %v1005 = vpop.f32.mrf.mxu0
        %v1006 = vpop.f32.mrf.mxu0
        %v1007 = vadd.f32 0.0, %v1006
        %v1008 = vpop.f32.mrf.mxu0
        %1009 = vmatprep.mubr.bf16.mxu0 0
        %1010 = vmatmul.mubr.bf16.gmra.mxu0 %v676
        %v1011 = vpop.f32.mrf.mxu0
        %v1012 = vadd.f32 0.0, %v1011
        %v1013 = vpop.f32.mrf.mxu0
        %v1014 = vpop.f32.mrf.mxu0
        %v1015 = vadd.f32 0.0, %v1014
        %v1016 = vpop.f32.mrf.mxu0
        %1017 = vmatprep.mubr.bf16.mxu0 0
        %1018 = vmatmul.mubr.bf16.gmra.mxu0 %v677
        %v1019 = vpop.f32.mrf.mxu0
        %v1020 = vadd.f32 0.0, %v1019
        %v1021 = vpop.f32.mrf.mxu0
        %v1022 = vpop.f32.mrf.mxu0
        %v1023 = vadd.f32 0.0, %v1022
        %v1024 = vpop.f32.mrf.mxu0
        %1025 = vmatprep.mubr.bf16.mxu0 0
        %1026 = vmatmul.mubr.bf16.gmra.mxu0 %v678
        %v1027 = vpop.f32.mrf.mxu0
        %v1028 = vadd.f32 0.0, %v1027
        %v1029 = vpop.f32.mrf.mxu0
        %v1030 = vpop.f32.mrf.mxu0
        %v1031 = vadd.f32 0.0, %v1030
        %v1032 = vpop.f32.mrf.mxu0
        %1033 = vmatprep.mubr.bf16.mxu0 0
        %1034 = vmatmul.mubr.bf16.gmra.mxu0 %v679
        %v1035 = vpop.f32.mrf.mxu0
        %v1036 = vadd.f32 0.0, %v1035
        %v1037 = vpop.f32.mrf.mxu0
        %v1038 = vpop.f32.mrf.mxu0
        %v1039 = vadd.f32 0.0, %v1038
        %v1040 = vpop.f32.mrf.mxu0
        %1041 = vmatprep.mubr.bf16.mxu0 0
        %1042 = vmatmul.mubr.bf16.gmra.mxu0 %v680
        %v1043 = vpop.f32.mrf.mxu0
        %v1044 = vadd.f32 0.0, %v1043
        %v1045 = vpop.f32.mrf.mxu0
        %v1046 = vpop.f32.mrf.mxu0
        %v1047 = vadd.f32 0.0, %v1046
        %v1048 = vpop.f32.mrf.mxu0
        %1049 = vdwg.mxu0
        %v1050 = vadd.f32 %v377, %v796
        %v1051 = vadd.f32 %v378, %v799
        %v1052 = vadd.f32 %v379, %v804
        %v1053 = vadd.f32 %v380, %v807
        %v1054 = vadd.f32 %v381, %v812
        %v1055 = vadd.f32 %v382, %v815
        %v1056 = vadd.f32 %v383, %v820
        %v1057 = vadd.f32 %v384, %v823
        %v1058 = vadd.f32 %v385, %v828
        %v1059 = vadd.f32 %v386, %v831
        %v1060 = vadd.f32 %v387, %v836
        %v1061 = vadd.f32 %v388, %v839
        %v1062 = vadd.f32 %v389, %v844
        %v1063 = vadd.f32 %v390, %v847
        %v1064 = vadd.f32 %v391, %v852
        %v1065 = vadd.f32 %v392, %v855
        %v1066 = vadd.f32 %v393, %v860
        %v1067 = vadd.f32 %v394, %v863
        %v1068 = vadd.f32 %v395, %v868
        %v1069 = vadd.f32 %v396, %v871
        %v1070 = vadd.f32 %v397, %v876
        %v1071 = vadd.f32 %v398, %v879
        %v1072 = vadd.f32 %v399, %v884
        %v1073 = vadd.f32 %v400, %v887
        %v1074 = vadd.f32 %v401, %v892
        %v1075 = vadd.f32 %v402, %v895
        %v1076 = vadd.f32 %v403, %v900
        %v1077 = vadd.f32 %v404, %v903
        %v1078 = vadd.f32 %v405, %v908
        %v1079 = vadd.f32 %v406, %v911
        %v1080 = vadd.f32 %v407, %v916
        %v1081 = vadd.f32 %v408, %v919
        %v1082 = vadd.f32 %v409, %v924
        %v1083 = vadd.f32 %v410, %v927
        %v1084 = vadd.f32 %v411, %v932
        %v1085 = vadd.f32 %v412, %v935
        %v1086 = vadd.f32 %v413, %v940
        %v1087 = vadd.f32 %v414, %v943
        %v1088 = vadd.f32 %v415, %v948
        %v1089 = vadd.f32 %v416, %v951
        %v1090 = vadd.f32 %v417, %v956
        %v1091 = vadd.f32 %v418, %v959
        %v1092 = vadd.f32 %v419, %v964
        %v1093 = vadd.f32 %v420, %v967
        %v1094 = vadd.f32 %v421, %v972
        %v1095 = vadd.f32 %v422, %v975
        %v1096 = vadd.f32 %v423, %v980
        %v1097 = vadd.f32 %v424, %v983
        %v1098 = vadd.f32 %v425, %v988
        %v1099 = vadd.f32 %v426, %v991
        %v1100 = vadd.f32 %v427, %v996
        %v1101 = vadd.f32 %v428, %v999
        %v1102 = vadd.f32 %v429, %v1004
        %v1103 = vadd.f32 %v430, %v1007
        %v1104 = vadd.f32 %v431, %v1012
        %v1105 = vadd.f32 %v432, %v1015
        %v1106 = vadd.f32 %v433, %v1020
        %v1107 = vadd.f32 %v434, %v1023
        %v1108 = vadd.f32 %v435, %v1028
        %v1109 = vadd.f32 %v436, %v1031
        %v1110 = vadd.f32 %v437, %v1036
        %v1111 = vadd.f32 %v438, %v1039
        %v1112 = vadd.f32 %v439, %v1044
        %v1113 = vadd.f32 %v440, %v1047
        %1114 = vst [vmem:[%s304] sm:$0xff] %v1050
        %1115 = vst [vmem:[%s304 + $0x8] sm:$0xff] %v1051
        %1116 = vst [vmem:[%s304 + $0x10] sm:$0xff] %v1052
        %1117 = vst [vmem:[%s304 + $0x18] sm:$0xff] %v1053
        %1118 = vst [vmem:[%s304 + $0x20] sm:$0xff] %v1054
        %1119 = vst [vmem:[%s304 + $0x28] sm:$0xff] %v1055
        %1120 = vst [vmem:[%s304 + $0x30] sm:$0xff] %v1056
        %1121 = vst [vmem:[%s304 + $0x38] sm:$0xff] %v1057
        %1122 = vst [vmem:[%s304 + $0x40] sm:$0xff] %v1058
        %1123 = vst [vmem:[%s304 + $0x48] sm:$0xff] %v1059
        %1124 = vst [vmem:[%s304 + $0x50] sm:$0xff] %v1060
        %1125 = vst [vmem:[%s304 + $0x58] sm:$0xff] %v1061
        %1126 = vst [vmem:[%s304 + $0x60] sm:$0xff] %v1062
        %1127 = vst [vmem:[%s304 + $0x68] sm:$0xff] %v1063
        %1128 = vst [vmem:[%s304 + $0x70] sm:$0xff] %v1064
        %1129 = vst [vmem:[%s304 + $0x78] sm:$0xff] %v1065
        %1130 = vst [vmem:[%s304 + $0x80] sm:$0xff] %v1066
        %1131 = vst [vmem:[%s304 + $0x88] sm:$0xff] %v1067
        %1132 = vst [vmem:[%s304 + $0x90] sm:$0xff] %v1068
        %1133 = vst [vmem:[%s304 + $0x98] sm:$0xff] %v1069
        %1134 = vst [vmem:[%s304 + $0xa0] sm:$0xff] %v1070
        %1135 = vst [vmem:[%s304 + $0xa8] sm:$0xff] %v1071
        %1136 = vst [vmem:[%s304 + $0xb0] sm:$0xff] %v1072
        %1137 = vst [vmem:[%s304 + $0xb8] sm:$0xff] %v1073
        %1138 = vst [vmem:[%s304 + $0xc0] sm:$0xff] %v1074
        %1139 = vst [vmem:[%s304 + $0xc8] sm:$0xff] %v1075
        %1140 = vst [vmem:[%s304 + $0xd0] sm:$0xff] %v1076
        %1141 = vst [vmem:[%s304 + $0xd8] sm:$0xff] %v1077
        %1142 = vst [vmem:[%s304 + $0xe0] sm:$0xff] %v1078
        %1143 = vst [vmem:[%s304 + $0xe8] sm:$0xff] %v1079
        %1144 = vst [vmem:[%s304 + $0xf0] sm:$0xff] %v1080
        %1145 = vst [vmem:[%s304 + $0xf8] sm:$0xff] %v1081
        %1146 = vst [vmem:[%s304 + $0x100] sm:$0xff] %v1082
        %1147 = vst [vmem:[%s304 + $0x108] sm:$0xff] %v1083
        %1148 = vst [vmem:[%s304 + $0x110] sm:$0xff] %v1084
        %1149 = vst [vmem:[%s304 + $0x118] sm:$0xff] %v1085
        %1150 = vst [vmem:[%s304 + $0x120] sm:$0xff] %v1086
        %1151 = vst [vmem:[%s304 + $0x128] sm:$0xff] %v1087
        %1152 = vst [vmem:[%s304 + $0x130] sm:$0xff] %v1088
        %1153 = vst [vmem:[%s304 + $0x138] sm:$0xff] %v1089
        %1154 = vst [vmem:[%s304 + $0x140] sm:$0xff] %v1090
        %1155 = vst [vmem:[%s304 + $0x148] sm:$0xff] %v1091
        %1156 = vst [vmem:[%s304 + $0x150] sm:$0xff] %v1092
        %1157 = vst [vmem:[%s304 + $0x158] sm:$0xff] %v1093
        %1158 = vst [vmem:[%s304 + $0x160] sm:$0xff] %v1094
        %1159 = vst [vmem:[%s304 + $0x168] sm:$0xff] %v1095
        %1160 = vst [vmem:[%s304 + $0x170] sm:$0xff] %v1096
        %1161 = vst [vmem:[%s304 + $0x178] sm:$0xff] %v1097
        %1162 = vst [vmem:[%s304 + $0x180] sm:$0xff] %v1098
        %1163 = vst [vmem:[%s304 + $0x188] sm:$0xff] %v1099
        %1164 = vst [vmem:[%s304 + $0x190] sm:$0xff] %v1100
        %1165 = vst [vmem:[%s304 + $0x198] sm:$0xff] %v1101
        %1166 = vst [vmem:[%s304 + $0x1a0] sm:$0xff] %v1102
        %1167 = vst [vmem:[%s304 + $0x1a8] sm:$0xff] %v1103
        %1168 = vst [vmem:[%s304 + $0x1b0] sm:$0xff] %v1104
        %1169 = vst [vmem:[%s304 + $0x1b8] sm:$0xff] %v1105
        %1170 = vst [vmem:[%s304 + $0x1c0] sm:$0xff] %v1106
        %1171 = vst [vmem:[%s304 + $0x1c8] sm:$0xff] %v1107
        %1172 = vst [vmem:[%s304 + $0x1d0] sm:$0xff] %v1108
        %1173 = vst [vmem:[%s304 + $0x1d8] sm:$0xff] %v1109
        %1174 = vst [vmem:[%s304 + $0x1e0] sm:$0xff] %v1110
        %1175 = vst [vmem:[%s304 + $0x1e8] sm:$0xff] %v1111
        %1176 = vst [vmem:[%s304 + $0x1f0] sm:$0xff] %v1112
        %1177 = vst [vmem:[%s304 + $0x1f8] sm:$0xff] %v1113
        // Predicated region
        $region57: #{tpu_custom_call.1} parent=35 // pred_check
          %p1178 = pneg %p309
        $region58: #{tpu_custom_call.1} parent=35 // pred_check_branch
          %1180 = sbr.rel (%p1178) target = $region60
        $region59: #{tpu_custom_call.1} parent=35 // pred_region
          %v1181 = vld [vmem:[%s304] sm:$0xff]
          %v1182 = vld [vmem:[%s304 + $0x8] sm:$0xff]
          %v1183 = vld [vmem:[%s304 + $0x10] sm:$0xff]
          %v1184 = vld [vmem:[%s304 + $0x18] sm:$0xff]
          %v1185 = vld [vmem:[%s304 + $0x20] sm:$0xff]
          %v1186 = vld [vmem:[%s304 + $0x28] sm:$0xff]
          %v1187 = vld [vmem:[%s304 + $0x30] sm:$0xff]
          %v1188 = vld [vmem:[%s304 + $0x38] sm:$0xff]
          %v1189 = vld [vmem:[%s304 + $0x40] sm:$0xff]
          %v1190 = vld [vmem:[%s304 + $0x48] sm:$0xff]
          %v1191 = vld [vmem:[%s304 + $0x50] sm:$0xff]
          %v1192 = vld [vmem:[%s304 + $0x58] sm:$0xff]
          %v1193 = vld [vmem:[%s304 + $0x60] sm:$0xff]
          %v1194 = vld [vmem:[%s304 + $0x68] sm:$0xff]
          %v1195 = vld [vmem:[%s304 + $0x70] sm:$0xff]
          %v1196 = vld [vmem:[%s304 + $0x78] sm:$0xff]
          %v1197 = vld [vmem:[%s304 + $0x80] sm:$0xff]
          %v1198 = vld [vmem:[%s304 + $0x88] sm:$0xff]
          %v1199 = vld [vmem:[%s304 + $0x90] sm:$0xff]
          %v1200 = vld [vmem:[%s304 + $0x98] sm:$0xff]
          %v1201 = vld [vmem:[%s304 + $0xa0] sm:$0xff]
          %v1202 = vld [vmem:[%s304 + $0xa8] sm:$0xff]
          %v1203 = vld [vmem:[%s304 + $0xb0] sm:$0xff]
          %v1204 = vld [vmem:[%s304 + $0xb8] sm:$0xff]
          %v1205 = vld [vmem:[%s304 + $0xc0] sm:$0xff]
          %v1206 = vld [vmem:[%s304 + $0xc8] sm:$0xff]
          %v1207 = vld [vmem:[%s304 + $0xd0] sm:$0xff]
          %v1208 = vld [vmem:[%s304 + $0xd8] sm:$0xff]
          %v1209 = vld [vmem:[%s304 + $0xe0] sm:$0xff]
          %v1210 = vld [vmem:[%s304 + $0xe8] sm:$0xff]
          %v1211 = vld [vmem:[%s304 + $0xf0] sm:$0xff]
          %v1212 = vld [vmem:[%s304 + $0xf8] sm:$0xff]
          %v1213 = vld [vmem:[%s304 + $0x100] sm:$0xff]
          %v1214 = vld [vmem:[%s304 + $0x108] sm:$0xff]
          %v1215 = vld [vmem:[%s304 + $0x110] sm:$0xff]
          %v1216 = vld [vmem:[%s304 + $0x118] sm:$0xff]
          %v1217 = vld [vmem:[%s304 + $0x120] sm:$0xff]
          %v1218 = vld [vmem:[%s304 + $0x128] sm:$0xff]
          %v1219 = vld [vmem:[%s304 + $0x130] sm:$0xff]
          %v1220 = vld [vmem:[%s304 + $0x138] sm:$0xff]
          %v1221 = vld [vmem:[%s304 + $0x140] sm:$0xff]
          %v1222 = vld [vmem:[%s304 + $0x148] sm:$0xff]
          %v1223 = vld [vmem:[%s304 + $0x150] sm:$0xff]
          %v1224 = vld [vmem:[%s304 + $0x158] sm:$0xff]
          %v1225 = vld [vmem:[%s304 + $0x160] sm:$0xff]
          %v1226 = vld [vmem:[%s304 + $0x168] sm:$0xff]
          %v1227 = vld [vmem:[%s304 + $0x170] sm:$0xff]
          %v1228 = vld [vmem:[%s304 + $0x178] sm:$0xff]
          %v1229 = vld [vmem:[%s304 + $0x180] sm:$0xff]
          %v1230 = vld [vmem:[%s304 + $0x188] sm:$0xff]
          %v1231 = vld [vmem:[%s304 + $0x190] sm:$0xff]
          %v1232 = vld [vmem:[%s304 + $0x198] sm:$0xff]
          %v1233 = vld [vmem:[%s304 + $0x1a0] sm:$0xff]
          %v1234 = vld [vmem:[%s304 + $0x1a8] sm:$0xff]
          %v1235 = vld [vmem:[%s304 + $0x1b0] sm:$0xff]
          %v1236 = vld [vmem:[%s304 + $0x1b8] sm:$0xff]
          %v1237 = vld [vmem:[%s304 + $0x1c0] sm:$0xff]
          %v1238 = vld [vmem:[%s304 + $0x1c8] sm:$0xff]
          %v1239 = vld [vmem:[%s304 + $0x1d0] sm:$0xff]
          %v1240 = vld [vmem:[%s304 + $0x1d8] sm:$0xff]
          %v1241 = vld [vmem:[%s304 + $0x1e0] sm:$0xff]
          %v1242 = vld [vmem:[%s304 + $0x1e8] sm:$0xff]
          %v1243 = vld [vmem:[%s304 + $0x1f0] sm:$0xff]
          %v1244 = vld [vmem:[%s304 + $0x1f8] sm:$0xff]
          %v1245 = vld [vmem:[#allocation7] sm:$0x1]
          %v1247 = vlaneseq
          %v1248 = vshrl.u32 %v1247, 7
          %v1249 = vsub.s32 0, %v1248
          %v1250 = vrot.slane %v1245, %v1249
          %v1252 = vmul.f32 %v1181, %v1250
          %v1253 = vmul.f32 %v1182, %v1250
          %v1254 = vmul.f32 %v1183, %v1250
          %v1255 = vmul.f32 %v1184, %v1250
          %v1256 = vmul.f32 %v1185, %v1250
          %v1257 = vmul.f32 %v1186, %v1250
          %v1258 = vmul.f32 %v1187, %v1250
          %v1259 = vmul.f32 %v1188, %v1250
          %v1260 = vmul.f32 %v1189, %v1250
          %v1261 = vmul.f32 %v1190, %v1250
          %v1262 = vmul.f32 %v1191, %v1250
          %v1263 = vmul.f32 %v1192, %v1250
          %v1264 = vmul.f32 %v1193, %v1250
          %v1265 = vmul.f32 %v1194, %v1250
          %v1266 = vmul.f32 %v1195, %v1250
          %v1267 = vmul.f32 %v1196, %v1250
          %v1268 = vmul.f32 %v1197, %v1250
          %v1269 = vmul.f32 %v1198, %v1250
          %v1270 = vmul.f32 %v1199, %v1250
          %v1271 = vmul.f32 %v1200, %v1250
          %v1272 = vmul.f32 %v1201, %v1250
          %v1273 = vmul.f32 %v1202, %v1250
          %v1274 = vmul.f32 %v1203, %v1250
          %v1275 = vmul.f32 %v1204, %v1250
          %v1276 = vmul.f32 %v1205, %v1250
          %v1277 = vmul.f32 %v1206, %v1250
          %v1278 = vmul.f32 %v1207, %v1250
          %v1279 = vmul.f32 %v1208, %v1250
          %v1280 = vmul.f32 %v1209, %v1250
          %v1281 = vmul.f32 %v1210, %v1250
          %v1282 = vmul.f32 %v1211, %v1250
          %v1283 = vmul.f32 %v1212, %v1250
          %v1284 = vmul.f32 %v1213, %v1250
          %v1285 = vmul.f32 %v1214, %v1250
          %v1286 = vmul.f32 %v1215, %v1250
          %v1287 = vmul.f32 %v1216, %v1250
          %v1288 = vmul.f32 %v1217, %v1250
          %v1289 = vmul.f32 %v1218, %v1250
          %v1290 = vmul.f32 %v1219, %v1250
          %v1291 = vmul.f32 %v1220, %v1250
          %v1292 = vmul.f32 %v1221, %v1250
          %v1293 = vmul.f32 %v1222, %v1250
          %v1294 = vmul.f32 %v1223, %v1250
          %v1295 = vmul.f32 %v1224, %v1250
          %v1296 = vmul.f32 %v1225, %v1250
          %v1297 = vmul.f32 %v1226, %v1250
          %v1298 = vmul.f32 %v1227, %v1250
          %v1299 = vmul.f32 %v1228, %v1250
          %v1300 = vmul.f32 %v1229, %v1250
          %v1301 = vmul.f32 %v1230, %v1250
          %v1302 = vmul.f32 %v1231, %v1250
          %v1303 = vmul.f32 %v1232, %v1250
          %v1304 = vmul.f32 %v1233, %v1250
          %v1305 = vmul.f32 %v1234, %v1250
          %v1306 = vmul.f32 %v1235, %v1250
          %v1307 = vmul.f32 %v1236, %v1250
          %v1308 = vmul.f32 %v1237, %v1250
          %v1309 = vmul.f32 %v1238, %v1250
          %v1310 = vmul.f32 %v1239, %v1250
          %v1311 = vmul.f32 %v1240, %v1250
          %v1312 = vmul.f32 %v1241, %v1250
          %v1313 = vmul.f32 %v1242, %v1250
          %v1314 = vmul.f32 %v1243, %v1250
          %v1315 = vmul.f32 %v1244, %v1250
          %v1316 = vld [vmem:[#allocation8] sm:$0x1]
          %v1318 = vlaneseq
          %v1319 = vshrl.u32 %v1318, 7
          %v1320 = vsub.s32 0, %v1319
          %v1321 = vrot.slane %v1316, %v1320
          %v1323 = vadd.f32 %v1252, %v1321
          %v1324 = vadd.f32 %v1253, %v1321
          %v1325 = vadd.f32 %v1254, %v1321
          %v1326 = vadd.f32 %v1255, %v1321
          %v1327 = vadd.f32 %v1256, %v1321
          %v1328 = vadd.f32 %v1257, %v1321
          %v1329 = vadd.f32 %v1258, %v1321
          %v1330 = vadd.f32 %v1259, %v1321
          %v1331 = vadd.f32 %v1260, %v1321
          %v1332 = vadd.f32 %v1261, %v1321
          %v1333 = vadd.f32 %v1262, %v1321
          %v1334 = vadd.f32 %v1263, %v1321
          %v1335 = vadd.f32 %v1264, %v1321
          %v1336 = vadd.f32 %v1265, %v1321
          %v1337 = vadd.f32 %v1266, %v1321
          %v1338 = vadd.f32 %v1267, %v1321
          %v1339 = vadd.f32 %v1268, %v1321
          %v1340 = vadd.f32 %v1269, %v1321
          %v1341 = vadd.f32 %v1270, %v1321
          %v1342 = vadd.f32 %v1271, %v1321
          %v1343 = vadd.f32 %v1272, %v1321
          %v1344 = vadd.f32 %v1273, %v1321
          %v1345 = vadd.f32 %v1274, %v1321
          %v1346 = vadd.f32 %v1275, %v1321
          %v1347 = vadd.f32 %v1276, %v1321
          %v1348 = vadd.f32 %v1277, %v1321
          %v1349 = vadd.f32 %v1278, %v1321
          %v1350 = vadd.f32 %v1279, %v1321
          %v1351 = vadd.f32 %v1280, %v1321
          %v1352 = vadd.f32 %v1281, %v1321
          %v1353 = vadd.f32 %v1282, %v1321
          %v1354 = vadd.f32 %v1283, %v1321
          %v1355 = vadd.f32 %v1284, %v1321
          %v1356 = vadd.f32 %v1285, %v1321
          %v1357 = vadd.f32 %v1286, %v1321
          %v1358 = vadd.f32 %v1287, %v1321
          %v1359 = vadd.f32 %v1288, %v1321
          %v1360 = vadd.f32 %v1289, %v1321
          %v1361 = vadd.f32 %v1290, %v1321
          %v1362 = vadd.f32 %v1291, %v1321
          %v1363 = vadd.f32 %v1292, %v1321
          %v1364 = vadd.f32 %v1293, %v1321
          %v1365 = vadd.f32 %v1294, %v1321
          %v1366 = vadd.f32 %v1295, %v1321
          %v1367 = vadd.f32 %v1296, %v1321
          %v1368 = vadd.f32 %v1297, %v1321
          %v1369 = vadd.f32 %v1298, %v1321
          %v1370 = vadd.f32 %v1299, %v1321
          %v1371 = vadd.f32 %v1300, %v1321
          %v1372 = vadd.f32 %v1301, %v1321
          %v1373 = vadd.f32 %v1302, %v1321
          %v1374 = vadd.f32 %v1303, %v1321
          %v1375 = vadd.f32 %v1304, %v1321
          %v1376 = vadd.f32 %v1305, %v1321
          %v1377 = vadd.f32 %v1306, %v1321
          %v1378 = vadd.f32 %v1307, %v1321
          %v1379 = vadd.f32 %v1308, %v1321
          %v1380 = vadd.f32 %v1309, %v1321
          %v1381 = vadd.f32 %v1310, %v1321
          %v1382 = vadd.f32 %v1311, %v1321
          %v1383 = vadd.f32 %v1312, %v1321
          %v1384 = vadd.f32 %v1313, %v1321
          %v1385 = vadd.f32 %v1314, %v1321
          %v1386 = vadd.f32 %v1315, %v1321
          %v1387 = vmax.f32 %v1323, 0.0
          %v1388 = vmax.f32 %v1324, 0.0
          %v1389 = vmax.f32 %v1325, 0.0
          %v1390 = vmax.f32 %v1326, 0.0
          %v1391 = vmax.f32 %v1327, 0.0
          %v1392 = vmax.f32 %v1328, 0.0
          %v1393 = vmax.f32 %v1329, 0.0
          %v1394 = vmax.f32 %v1330, 0.0
          %v1395 = vmax.f32 %v1331, 0.0
          %v1396 = vmax.f32 %v1332, 0.0
          %v1397 = vmax.f32 %v1333, 0.0
          %v1398 = vmax.f32 %v1334, 0.0
          %v1399 = vmax.f32 %v1335, 0.0
          %v1400 = vmax.f32 %v1336, 0.0
          %v1401 = vmax.f32 %v1337, 0.0
          %v1402 = vmax.f32 %v1338, 0.0
          %v1403 = vmax.f32 %v1339, 0.0
          %v1404 = vmax.f32 %v1340, 0.0
          %v1405 = vmax.f32 %v1341, 0.0
          %v1406 = vmax.f32 %v1342, 0.0
          %v1407 = vmax.f32 %v1343, 0.0
          %v1408 = vmax.f32 %v1344, 0.0
          %v1409 = vmax.f32 %v1345, 0.0
          %v1410 = vmax.f32 %v1346, 0.0
          %v1411 = vmax.f32 %v1347, 0.0
          %v1412 = vmax.f32 %v1348, 0.0
          %v1413 = vmax.f32 %v1349, 0.0
          %v1414 = vmax.f32 %v1350, 0.0
          %v1415 = vmax.f32 %v1351, 0.0
          %v1416 = vmax.f32 %v1352, 0.0
          %v1417 = vmax.f32 %v1353, 0.0
          %v1418 = vmax.f32 %v1354, 0.0
          %v1419 = vmax.f32 %v1355, 0.0
          %v1420 = vmax.f32 %v1356, 0.0
          %v1421 = vmax.f32 %v1357, 0.0
          %v1422 = vmax.f32 %v1358, 0.0
          %v1423 = vmax.f32 %v1359, 0.0
          %v1424 = vmax.f32 %v1360, 0.0
          %v1425 = vmax.f32 %v1361, 0.0
          %v1426 = vmax.f32 %v1362, 0.0
          %v1427 = vmax.f32 %v1363, 0.0
          %v1428 = vmax.f32 %v1364, 0.0
          %v1429 = vmax.f32 %v1365, 0.0
          %v1430 = vmax.f32 %v1366, 0.0
          %v1431 = vmax.f32 %v1367, 0.0
          %v1432 = vmax.f32 %v1368, 0.0
          %v1433 = vmax.f32 %v1369, 0.0
          %v1434 = vmax.f32 %v1370, 0.0
          %v1435 = vmax.f32 %v1371, 0.0
          %v1436 = vmax.f32 %v1372, 0.0
          %v1437 = vmax.f32 %v1373, 0.0
          %v1438 = vmax.f32 %v1374, 0.0
          %v1439 = vmax.f32 %v1375, 0.0
          %v1440 = vmax.f32 %v1376, 0.0
          %v1441 = vmax.f32 %v1377, 0.0
          %v1442 = vmax.f32 %v1378, 0.0
          %v1443 = vmax.f32 %v1379, 0.0
          %v1444 = vmax.f32 %v1380, 0.0
          %v1445 = vmax.f32 %v1381, 0.0
          %v1446 = vmax.f32 %v1382, 0.0
          %v1447 = vmax.f32 %v1383, 0.0
          %v1448 = vmax.f32 %v1384, 0.0
          %v1449 = vmax.f32 %v1385, 0.0
          %v1450 = vmax.f32 %v1386, 0.0
          %1451 = vst [vmem:[%s304] sm:$0xff] %v1387
          %1452 = vst [vmem:[%s304 + $0x8] sm:$0xff] %v1388
          %1453 = vst [vmem:[%s304 + $0x10] sm:$0xff] %v1389
          %1454 = vst [vmem:[%s304 + $0x18] sm:$0xff] %v1390
          %1455 = vst [vmem:[%s304 + $0x20] sm:$0xff] %v1391
          %1456 = vst [vmem:[%s304 + $0x28] sm:$0xff] %v1392
          %1457 = vst [vmem:[%s304 + $0x30] sm:$0xff] %v1393
          %1458 = vst [vmem:[%s304 + $0x38] sm:$0xff] %v1394
          %1459 = vst [vmem:[%s304 + $0x40] sm:$0xff] %v1395
          %1460 = vst [vmem:[%s304 + $0x48] sm:$0xff] %v1396
          %1461 = vst [vmem:[%s304 + $0x50] sm:$0xff] %v1397
          %1462 = vst [vmem:[%s304 + $0x58] sm:$0xff] %v1398
          %1463 = vst [vmem:[%s304 + $0x60] sm:$0xff] %v1399
          %1464 = vst [vmem:[%s304 + $0x68] sm:$0xff] %v1400
          %1465 = vst [vmem:[%s304 + $0x70] sm:$0xff] %v1401
          %1466 = vst [vmem:[%s304 + $0x78] sm:$0xff] %v1402
          %1467 = vst [vmem:[%s304 + $0x80] sm:$0xff] %v1403
          %1468 = vst [vmem:[%s304 + $0x88] sm:$0xff] %v1404
          %1469 = vst [vmem:[%s304 + $0x90] sm:$0xff] %v1405
          %1470 = vst [vmem:[%s304 + $0x98] sm:$0xff] %v1406
          %1471 = vst [vmem:[%s304 + $0xa0] sm:$0xff] %v1407
          %1472 = vst [vmem:[%s304 + $0xa8] sm:$0xff] %v1408
          %1473 = vst [vmem:[%s304 + $0xb0] sm:$0xff] %v1409
          %1474 = vst [vmem:[%s304 + $0xb8] sm:$0xff] %v1410
          %1475 = vst [vmem:[%s304 + $0xc0] sm:$0xff] %v1411
          %1476 = vst [vmem:[%s304 + $0xc8] sm:$0xff] %v1412
          %1477 = vst [vmem:[%s304 + $0xd0] sm:$0xff] %v1413
          %1478 = vst [vmem:[%s304 + $0xd8] sm:$0xff] %v1414
          %1479 = vst [vmem:[%s304 + $0xe0] sm:$0xff] %v1415
          %1480 = vst [vmem:[%s304 + $0xe8] sm:$0xff] %v1416
          %1481 = vst [vmem:[%s304 + $0xf0] sm:$0xff] %v1417
          %1482 = vst [vmem:[%s304 + $0xf8] sm:$0xff] %v1418
          %1483 = vst [vmem:[%s304 + $0x100] sm:$0xff] %v1419
          %1484 = vst [vmem:[%s304 + $0x108] sm:$0xff] %v1420
          %1485 = vst [vmem:[%s304 + $0x110] sm:$0xff] %v1421
          %1486 = vst [vmem:[%s304 + $0x118] sm:$0xff] %v1422
          %1487 = vst [vmem:[%s304 + $0x120] sm:$0xff] %v1423
          %1488 = vst [vmem:[%s304 + $0x128] sm:$0xff] %v1424
          %1489 = vst [vmem:[%s304 + $0x130] sm:$0xff] %v1425
          %1490 = vst [vmem:[%s304 + $0x138] sm:$0xff] %v1426
          %1491 = vst [vmem:[%s304 + $0x140] sm:$0xff] %v1427
          %1492 = vst [vmem:[%s304 + $0x148] sm:$0xff] %v1428
          %1493 = vst [vmem:[%s304 + $0x150] sm:$0xff] %v1429
          %1494 = vst [vmem:[%s304 + $0x158] sm:$0xff] %v1430
          %1495 = vst [vmem:[%s304 + $0x160] sm:$0xff] %v1431
          %1496 = vst [vmem:[%s304 + $0x168] sm:$0xff] %v1432
          %1497 = vst [vmem:[%s304 + $0x170] sm:$0xff] %v1433
          %1498 = vst [vmem:[%s304 + $0x178] sm:$0xff] %v1434
          %1499 = vst [vmem:[%s304 + $0x180] sm:$0xff] %v1435
          %1500 = vst [vmem:[%s304 + $0x188] sm:$0xff] %v1436
          %1501 = vst [vmem:[%s304 + $0x190] sm:$0xff] %v1437
          %1502 = vst [vmem:[%s304 + $0x198] sm:$0xff] %v1438
          %1503 = vst [vmem:[%s304 + $0x1a0] sm:$0xff] %v1439
          %1504 = vst [vmem:[%s304 + $0x1a8] sm:$0xff] %v1440
          %1505 = vst [vmem:[%s304 + $0x1b0] sm:$0xff] %v1441
          %1506 = vst [vmem:[%s304 + $0x1b8] sm:$0xff] %v1442
          %1507 = vst [vmem:[%s304 + $0x1c0] sm:$0xff] %v1443
          %1508 = vst [vmem:[%s304 + $0x1c8] sm:$0xff] %v1444
          %1509 = vst [vmem:[%s304 + $0x1d0] sm:$0xff] %v1445
          %1510 = vst [vmem:[%s304 + $0x1d8] sm:$0xff] %v1446
          %1511 = vst [vmem:[%s304 + $0x1e0] sm:$0xff] %v1447
          %1512 = vst [vmem:[%s304 + $0x1e8] sm:$0xff] %v1448
          %1513 = vst [vmem:[%s304 + $0x1f0] sm:$0xff] %v1449
          %1514 = vst [vmem:[%s304 + $0x1f8] sm:$0xff] %v1450
        $region60: #{tpu_custom_call.1} parent=35 // pred_fallthru
          _
        %s1515 = sand.u32 %s160, 1
        %s1516 = scalar_lea.sflag [#allocation4], %s1515
        %s1517 = sand.u32 %s160, 1
        %s1518 = smul.addr %s1517, 512
        %s1519 = scalar_lea.vmem [#allocation10], %s1518
        // Predicated region
        $region61: #{tpu_custom_call.1} parent=35 // pred_check
          %p1520 = pneg %p170
        $region62: #{tpu_custom_call.1} parent=35 // pred_check_branch
          %1522 = sbr.rel (%p1520) target = $region64
        $region63: #{tpu_custom_call.1} parent=35 // pred_region
          %s1523 = smul.u32 64, %s28
          %s1525 = ssub.s32 8192, 8192
          %1526 = vsyncadd %s1516, %s1525
          %s1527 = sadd.s32 %s29, %s1523
          %s1528 = smul.addr %s1527, 128
          %s1529 = scalar_lea.hbm %s4, %s1528
          %s1530 = sshll.u32 %s1519, 4
          %s1531 = int_to_ptr.vmem [resolvable:$true] %s1530
          %1536 = dma.vmem_to_hbm [thread:$0]  %s1531, 8192, %s1529, %s1516, 128, 128, 8
        $region64: #{tpu_custom_call.1} parent=35 // pred_fallthru
          _
      $region36: #{tpu_custom_call.1} parent=5 // pred_fallthru
        _
      %p1537 = scmp.le.s32.totalorder 2, %s18
      // Predicated region
      $region65: #{tpu_custom_call.1} parent=5 // pred_check
        %p1538 = pneg %p1537
      $region66: #{tpu_custom_call.1} parent=5 // pred_check_branch
        %1540 = sbr.rel (%p1538) target = $region68
      $region67: #{tpu_custom_call.1} parent=5 // pred_region
        %s1541 = ssub.s32 %s18, 2
        // Predicated region
        $region69: #{tpu_custom_call.1} parent=67 // pred_check
          %p1542 = pneg %p176
        $region70: #{tpu_custom_call.1} parent=67 // pred_check_branch
          %1544 = sbr.rel (%p1542) target = $region72
        $region71: #{tpu_custom_call.1} parent=67 // pred_region
          %s1545 = sand.u32 %s161, 1
          %s1546 = scalar_lea.sflag [#allocation4], %s1545
          %s1547 = sand.u32 %s161, 1
          %s1548 = smul.addr %s1547, 512
          %s1549 = scalar_lea.vmem [#allocation10], %s1548
          %1550 = dma.done %s1546, 8192
        $region72: #{tpu_custom_call.1} parent=67 // pred_fallthru
          _
      $region68: #{tpu_custom_call.1} parent=5 // pred_fallthru
        _
    $region6: #{tpu_custom_call.1} parent=1 // loop_footer
      %s22 = sadd.s32 1, %s18
    $region7: #{tpu_custom_call.1} parent=1 // loop_footer_branch
      %17 = sbr.rel target = $region3
    $region8: #{tpu_custom_call.1} parent=1 // loop_exit
      _
    %1551 = vsyncpa [#allocation3], 1
    %s1552 = scalar_lea.sflag [#allocation3], 1
    %1553 = vsyncpa %s1552, 1
    %1554 = vsyncpa [#allocation6], 1
    %1555 = vsyncpa [#allocation9], 1
    %1556 = vsyncpa [#allocation4], 1
    %s1557 = scalar_lea.sflag [#allocation4], 1
    %1558 = vsyncpa %s1557, 1

</llo_original>
